<compile_context>
chip_gen: v6e
topology: v6e:2x2x1
jax: 0.10.0
libtpu: 0.0.40
codegen_flags: <defaults>
</compile_context>

<pallas_src>
import math
import numpy as np
import jax
import jax.numpy as jnp
from jax import lax
from jax.experimental import pallas as pl
from jax.experimental.pallas import tpu as pltpu  # noqa: F401  (kept for TPU-specific tuning hooks)

# ------------------------- static configuration -------------------------
B, CIN, COUT = 2, 4, 4
H = W = 16
K = 3                      # ModulatedConv2d kernel_size
STYLE_DIM = 8
MARGIN = 10
UPSAMPLE_ARG = 1           # AliasFreeConv `upsample` argument
DEMODULATE = True

NEG_SLOPE = 0.2
ACT_GAIN = math.sqrt(2.0)  # fused_leaky_relu default scale

# 1-D separable filters (buffers of the module; chosen deterministically here)
_UP_RAW = np.array([1.0, 3.0, 3.0, 1.0], np.float64)
_UP_RAW /= _UP_RAW.sum()
DOWN_FILTER = np.array([1.0, 3.0, 3.0, 1.0], np.float64)
DOWN_FILTER /= DOWN_FILTER.sum()

ACT_UP = UPSAMPLE_ARG * 2          # AliasFreeActivation upsample factor = 2
ACT_DOWN = 2                       # AliasFreeActivation downsample factor = 2
UP_FILTER = _UP_RAW * ACT_UP       # 1-D filter branch: filter * upsample

LU = UP_FILTER.shape[0]
LD = DOWN_FILTER.shape[0]

_pu = LU - ACT_UP
if K != 3:                                                   # `padding` flag in the module
    UP_PAD = ((_pu + 1) // 2 + ACT_UP - 1, _pu // 2)
else:
    UP_PAD = ((_pu + 1) // 2 + ACT_UP * 2 - 1, _pu // 2 + ACT_UP)
_pd = LD - ACT_DOWN
DOWN_PAD = ((_pd + 1) // 2, _pd // 2)

HO, WO = H - K + 1, W - K + 1                                # conv output (padding=0) = 14x14
UH = HO * ACT_UP + UP_PAD[0] + UP_PAD[1] - LU + 1            # full-rate upsampled = 32
UW = WO * ACT_UP + UP_PAD[0] + UP_PAD[1] - LU + 1            # 32
NPH, NPW = UH // 2, UW // 2                                  # polyphase grid = 16x16
DOH = (UH + DOWN_PAD[0] + DOWN_PAD[1] - LD) // ACT_DOWN + 1  # downsampled = 16
DOW = (UW + DOWN_PAD[0] + DOWN_PAD[1] - LD) // ACT_DOWN + 1  # 16

# The closed-form polyphase slices below hard-code this exact filter/pad configuration.
assert (ACT_UP, ACT_DOWN, LU, LD) == (2, 2, 4, 4)
assert UP_PAD == (4, 3) and DOWN_PAD == (1, 1)
assert UH == 2 * NPH and UW == 2 * NPW
assert NPH == HO + 2 and NPW == WO + 2
assert DOH == NPH and DOW == NPW

# upfirdn2d flips the filter before conv2d (correlation) -> effective taps = reversed filter.
GU = tuple(float(UP_FILTER[LU - 1 - k]) for k in range(LU))
GD = tuple(float(DOWN_FILTER[LD - 1 - k]) for k in range(LD))
# Fold the sqrt(2) activation gain into ONE axis of the down-FIR (horizontal pass);
# everything downstream of the leaky is linear, so this is exact.
GDH = tuple(g * ACT_GAIN for g in GD)      # horizontal down taps (carry the gain)
GDV = GD                                   # vertical down taps

PADC = 3                   # per-block zero guard ring around the conv output
EXT = NPH + 2              # phase grid extended by one (zero) sample per side = 18
NTAP = CIN * K * K         # 36 modulated-conv taps
BIAS_ROW = NTAP            # row index of the packed bias vector
MASK_ROW = NTAP + 1        # row index of the packed guard-ring mask
P_ROWS = NTAP + 2

# Lane packing: NBLK = B*COUT channel blocks of BW lanes each, side by side.
NBLK = B * COUT            # 8
BW = 32                    # >= WO + 2*PADC (=20) valid cols + slack; 8*32 = 256 lanes
TOT = NBLK * BW            # 256 (multiple of 128 -> fully unmasked output stores)
assert BW >= WO + 2 * PADC + 2


# ------------------------- in-kernel helpers (traced) -------------------------
def _shl(a, s):
    """Shift columns left by s over the whole packed slab: out[:, j] = a[:, j+s].

    Zero fill on the right.  Cross-block leakage only lands in each block's slack /
    guard columns (never read as valid data), because every block keeps >= PADC zero
    guard columns on both sides of its data.
    """
    if s == 0:
        return a
    return jnp.concatenate(
        [a[:, s:], jnp.zeros((a.shape[0], s), jnp.float32)], axis=1)


def _leaky(x):
    # gain sqrt(2) is folded into GDH, so this is just the select
    return jnp.where(x >= 0.0, x, x * NEG_SLOPE)


# ------------------------- fused Pallas kernel (gridless) -------------------------
def _alias_free_kernel(x_ref, p_ref, o_ref):
    # x_ref: (CIN, H, TOT)   lane-packed input: block (b, co) holds x[b, ci] at
    #                        block-local columns [PADC, PADC+W); replicated over co.
    # p_ref: (P_ROWS, TOT)   rows 0..35: tap (ci,ky,kx) weight w[b,co,ci,ky,kx]
    #                        replicated across block (b, co); row 36: activation bias;
    #                        row 37: guard-ring column mask (1 on [PADC, PADC+WO)).
    # o_ref: (DOH, TOT)      block (b, co) holds the final 16x16 tile at columns [0, DOW).

    # ---- 3x3 grouped modulated conv (VALID): one wide FMA per tap over all blocks ----
    accs = []
    for ci in range(CIN):
        xc = x_ref[ci]                                     # (H, TOT)
        xs = (xc, _shl(xc, 1), _shl(xc, 2))                # column shifts for kx = 0,1,2
        a = None
        for ky in range(K):
            for kx in range(K):
                t = (ci * K + ky) * K + kx
                term = p_ref[t] * xs[kx][ky:ky + HO, :]    # (TOT,) * (HO, TOT)
                a = term if a is None else a + term
        accs.append(a)                                     # per-ci partials (shorter dep chain)
    acc = accs[0]
    for a in accs[1:]:
        acc = acc + a                                      # (HO, TOT): conv output at cols [3,17)

    # ---- + bias, zero the guard / slack columns once, pad 3 zero rows top & bottom ----
    inner = (acc + p_ref[BIAS_ROW]) * p_ref[MASK_ROW]      # (HO, TOT)
    zrows = jnp.zeros((PADC, TOT), jnp.float32)
    cp = jnp.concatenate([zrows, inner, zrows], axis=0)    # (HO + 2*PADC, TOT) = (20, TOT)

    # ---- x2 up-FIR, separable + polyphase (zero-inserted signal never materialized) ----
    cp1, cp2 = _shl(cp, 1), _shl(cp, 2)
    h0 = GU[0] * cp + GU[2] * cp1                          # x-phase 0 (valid cols [0, EXT))
    h1 = GU[1] * cp1 + GU[3] * cp2                         # x-phase 1

    def down_x(zp0, zp1):                                  # horizontal down-FIR, gain folded in
        return (GDH[0] * zp1 + GDH[1] * _shl(zp0, 1)
                + GDH[2] * _shl(zp1, 1) + GDH[3] * _shl(zp0, 2))

    # y-phase 0: vertical up pass -> leaky -> horizontal down pass
    z00 = _leaky(GU[0] * h0[0:EXT, :] + GU[2] * h0[1:EXT + 1, :])
    z01 = _leaky(GU[0] * h1[0:EXT, :] + GU[2] * h1[1:EXT + 1, :])
    v0 = down_x(z00, z01)                                  # (EXT, TOT), valid cols [0, DOW)
    # y-phase 1
    z10 = _leaky(GU[1] * h0[1:EXT + 1, :] + GU[3] * h0[2:EXT + 2, :])
    z11 = _leaky(GU[1] * h1[1:EXT + 1, :] + GU[3] * h1[2:EXT + 2, :])
    v1 = down_x(z10, z11)

    # ---- vertical down-FIR with fused decimation; single dense (16, 256) store ----
    out = (GDV[0] * v1[0:DOH, :] + GDV[1] * v0[1:DOH + 1, :]
           + GDV[2] * v1[1:DOH + 1, :] + GDV[3] * v0[2:DOH + 2, :])
    o_ref[...] = out


# ------------------------- parameter / layout setup (plain JAX) -------------------------
def equal_linear(style, w, b):
    # EqualLinear(style_dim, in_channel, bias_init=1), lr_mul=1, no activation
    scale = 1.0 / math.sqrt(w.shape[1])
    return style @ (w * scale).T + b


def make_modulated_weight(base_w, style_mod, ema_var):
    # base_w: (1, COUT, CIN, K, K); style_mod: (B, CIN) -> (B, COUT, CIN, K, K)
    scale = 1.0 / math.sqrt(CIN * K * K)
    w = scale * base_w * style_mod[:, None, :, None, None]
    if DEMODULATE:
        demod = lax.rsqrt(jnp.sum(w * w, axis=(2, 3, 4)) + 1e-8)
        w = w * demod[:, :, None, None, None]
    # TODO(synk): training-mode EMA update of ema_var (in-place buffer) not implemented;
    # eval-mode forward only.
    w = w / (jnp.sqrt(ema_var) + 1e-8)
    return w


def _pack_input(x):
    # (B, CIN, H, W) -> (CIN, H, TOT): block (b, co) of the ci-th slab holds x[b, ci]
    # at block-local cols [PADC, PADC+W); replicated across co, zero elsewhere.
    xr = jnp.broadcast_to(x[:, None], (B, COUT, CIN, H, W))
    xr = xr.transpose(2, 3, 0, 1, 4)                              # (CIN, H, B, COUT, W)
    xr = jnp.pad(xr, ((0, 0), (0, 0), (0, 0), (0, 0), (PADC, BW - PADC - W)))
    return xr.reshape(CIN, H, TOT).astype(jnp.float32)


def _pack_params(w, bias):
    # rows 0..35: tap (ci,ky,kx) -> w[b, co, ci, ky, kx] replicated over block (b, co)
    wt = w.transpose(2, 3, 4, 0, 1).reshape(NTAP, NBLK)           # (36, 8)
    wrows = jnp.broadcast_to(wt[:, :, None], (NTAP, NBLK, BW)).reshape(NTAP, TOT)
    brow = jnp.broadcast_to(bias[None, :, None], (B, COUT, BW)).reshape(1, TOT)
    cols = jnp.arange(BW)
    mask1 = ((cols >= PADC) & (cols < PADC + WO)).astype(jnp.float32)
    mrow = jnp.broadcast_to(mask1[None, :], (NBLK, BW)).reshape(1, TOT)
    return jnp.concatenate([wrows, brow, mrow], axis=0).astype(jnp.float32)   # (38, TOT)


def alias_free_conv(x, style, base_w, mod_w, mod_b, bias, ema_var):
    # --- ModulatedConv2d parameter setup (tiny; stays in XLA) ---
    style_mod = equal_linear(style, mod_w, mod_b)                 # (B, CIN)
    w = make_modulated_weight(base_w, style_mod, ema_var)         # (B, COUT, CIN, K, K)

    xpk = _pack_input(x)                                          # (CIN, H, 256)   ~64 KiB
    ppk = _pack_params(w, bias)                                   # (38, 256)       ~38 KiB

    # --- single fused conv + alias-free activation kernel (gridless, whole arrays in VMEM) ---
    packed = pl.pallas_call(
        _alias_free_kernel,
        out_shape=jax.ShapeDtypeStruct((DOH, TOT), jnp.float32),
    )(xpk, ppk)

    # undo the lane packing (layout plumbing only)
    out = packed.reshape(DOH, NBLK, BW)[:, :, :DOW]               # (16, 8, 16)
    out = out.transpose(1, 0, 2).reshape(B, COUT, DOH, DOW)

    # margin crop: m = (MARGIN*up - MARGIN*down)//2 == 0 for this configuration
    m = (MARGIN * ACT_UP - MARGIN * ACT_DOWN) // 2
    if m > 0:
        out = out[:, :, m:-m, m:-m]
    return out


# ------------------------- pure-JAX reference (mirrors PyTorch upfirdn2d) -------------------------
def _upfirdn2d_ref(x, kernel2d, up, down, pad):
    up_x, up_y = up
    down_x, down_y = down
    px0, px1, py0, py1 = pad
    n, c, h, w = x.shape
    out = jnp.zeros((n, c, h * up_y, w * up_x), x.dtype).at[:, :, ::up_y, ::up_x].set(x)
    out = jnp.pad(out, ((0, 0), (0, 0),
                        (max(py0, 0), max(py1, 0)), (max(px0, 0), max(px1, 0))))
    out = out[:, :, max(-py0, 0): out.shape[2] - max(-py1, 0),
              max(-px0, 0): out.shape[3] - max(-px1, 0)]
    wk = jnp.flip(jnp.asarray(kernel2d, jnp.float32), (0, 1))[None, None]
    wk = jnp.tile(wk, (c, 1, 1, 1))
    out = lax.conv_general_dilated(out, wk, (1, 1), 'VALID',
                                   dimension_numbers=('NCHW', 'OIHW', 'NCHW'),
                                   feature_group_count=c)
    return out[:, :, ::down_y, ::down_x]


def _upsample_ref(x, k1d, factor, pad):
    k1d = jnp.asarray(k1d, jnp.float32)
    x = _upfirdn2d_ref(x, k1d[None, :], (factor, 1), (1, 1), (pad[0], pad[1], 0, 0))
    x = _upfirdn2d_ref(x, k1d[:, None], (1, factor), (1, 1), (0, 0, pad[0], pad[1]))
    return x


def _downsample_ref(x, k1d, factor, pad):
    k1d = jnp.asarray(k1d, jnp.float32)
    x = _upfirdn2d_ref(x, k1d[None, :], (1, 1), (factor, 1), (pad[0], pad[1], 0, 0))
    x = _upfirdn2d_ref(x, k1d[:, None], (1, 1), (1, factor), (0, 0, pad[0], pad[1]))
    return x


def reference_forward(x, style, base_w, mod_w, mod_b, bias, ema_var):
    style_mod = equal_linear(style, mod_w, mod_b)
    w = make_modulated_weight(base_w, style_mod, ema_var)
    xg = x.reshape(1, B * CIN, H, W)
    wg = w.reshape(B * COUT, CIN, K, K)
    out = lax.conv_general_dilated(xg, wg, (1, 1), 'VALID',
                                   dimension_numbers=('NCHW', 'OIHW', 'NCHW'),
                                   feature_group_count=B)
    out = out.reshape(B, COUT, HO, WO)
    out = out + bias[None, :, None, None]
    out = _upsample_ref(out, UP_FILTER, ACT_UP, UP_PAD)
    out = jnp.where(out >= 0.0, out, out * NEG_SLOPE) * ACT_GAIN
    out = _downsample_ref(out, DOWN_FILTER, ACT_DOWN, DOWN_PAD)
    m = (MARGIN * ACT_UP - MARGIN * ACT_DOWN) // 2
    if m > 0:
        out = out[:, :, m:-m, m:-m]
    return out


# ------------------------- main -------------------------
if __name__ == "__main__":
    key = jax.random.PRNGKey(0)
    k1, k2, k3, k4, k5 = jax.random.split(key, 5)

    x = jax.random.normal(k1, (B, CIN, H, W), jnp.float32)
    style = jax.random.normal(k2, (B, STYLE_DIM), jnp.float32)

    # Parameters (shapes per the module __init__; deterministic init in-script)
    base_w = jax.random.normal(k3, (1, COUT, CIN, K, K), jnp.float32)   # ModulatedConv2d.weight
    mod_w = jax.random.normal(k4, (CIN, STYLE_DIM), jnp.float32)        # EqualLinear.weight
    mod_b = jnp.ones((CIN,), jnp.float32)                               # EqualLinear.bias (bias_init=1)
    bias = 0.1 * jax.random.normal(k5, (COUT,), jnp.float32)            # AliasFreeActivation.bias
    ema_var = jnp.float32(1.0)                                          # ema_var buffer (eval mode)

    fwd = jax.jit(alias_free_conv)
    out = jax.block_until_ready(fwd(x, style, base_w, mod_w, mod_b, bias, ema_var))

    ref = jax.block_until_ready(
        reference_forward(x, style, base_w, mod_w, mod_b, bias, ema_var))

    assert out.shape == (B, COUT, 16, 16), out.shape
    np.testing.assert_allclose(np.asarray(out), np.asarray(ref), rtol=1e-3, atol=1e-3)
    print("KERNEL_OK")
</pallas_src>

<mosaic_0001>
module attributes {stable_mosaic.version = 11 : i64} {
  func.func @_alias_free_kernel(%arg0: memref<4x16x256xf32, #tpu.memory_space<vmem>>, %arg1: memref<38x256xf32, #tpu.memory_space<vmem>>, %arg2: memref<16x256xf32, #tpu.memory_space<vmem>>) attributes {dimension_semantics = [], scalar_prefetch = 0 : i64, scratch_operands = 0 : i64, tpu.core_type = #tpu.core_type<tc>} {
    %c0 = arith.constant 0 : index
    %c0_0 = arith.constant 0 : index
    %c0_1 = arith.constant 0 : index
    %0 = vector.load %arg0[%c0, %c0_0, %c0_1] : memref<4x16x256xf32, #tpu.memory_space<vmem>>, vector<1x16x256xf32>
    %1 = vector.shape_cast %0 : vector<1x16x256xf32> to vector<16x256xf32>
    %2 = vector.extract_strided_slice %1 {offsets = [0, 1], sizes = [16, 255], strides = [1, 1]} : vector<16x256xf32> to vector<16x255xf32>
    %cst = arith.constant 0.000000e+00 : f32
    %3 = vector.broadcast %cst : f32 to vector<16x1xf32>
    %4 = tpu.concatenate %2, %3 in 1 : vector<16x255xf32>, vector<16x1xf32> -> vector<16x256xf32>
    %5 = vector.extract_strided_slice %1 {offsets = [0, 2], sizes = [16, 254], strides = [1, 1]} : vector<16x256xf32> to vector<16x254xf32>
    %cst_2 = arith.constant 0.000000e+00 : f32
    %6 = vector.broadcast %cst_2 : f32 to vector<16x2xf32>
    %7 = tpu.concatenate %5, %6 in 1 : vector<16x254xf32>, vector<16x2xf32> -> vector<16x256xf32>
    %c0_3 = arith.constant 0 : index
    %c0_4 = arith.constant 0 : index
    %8 = vector.load %arg1[%c0_3, %c0_4] : memref<38x256xf32, #tpu.memory_space<vmem>>, vector<1x256xf32>
    %9 = vector.shape_cast %8 : vector<1x256xf32> to vector<256xf32>
    %10 = vector.extract_strided_slice %1 {offsets = [0, 0], sizes = [14, 256], strides = [1, 1]} : vector<16x256xf32> to vector<14x256xf32>
    %11 = vector.shape_cast %9 : vector<256xf32> to vector<1x256xf32>
    %12 = vector.broadcast %11 : vector<1x256xf32> to vector<14x256xf32>
    %13 = arith.mulf %12, %10 : vector<14x256xf32>
    %c1 = arith.constant 1 : index
    %c0_5 = arith.constant 0 : index
    %14 = vector.load %arg1[%c1, %c0_5] : memref<38x256xf32, #tpu.memory_space<vmem>>, vector<1x256xf32>
    %15 = vector.shape_cast %14 : vector<1x256xf32> to vector<256xf32>
    %16 = vector.extract_strided_slice %4 {offsets = [0, 0], sizes = [14, 256], strides = [1, 1]} : vector<16x256xf32> to vector<14x256xf32>
    %17 = vector.shape_cast %15 : vector<256xf32> to vector<1x256xf32>
    %18 = vector.broadcast %17 : vector<1x256xf32> to vector<14x256xf32>
    %19 = arith.mulf %18, %16 : vector<14x256xf32>
    %20 = arith.addf %13, %19 : vector<14x256xf32>
    %c2 = arith.constant 2 : index
    %c0_6 = arith.constant 0 : index
    %21 = vector.load %arg1[%c2, %c0_6] : memref<38x256xf32, #tpu.memory_space<vmem>>, vector<1x256xf32>
    %22 = vector.shape_cast %21 : vector<1x256xf32> to vector<256xf32>
    %23 = vector.extract_strided_slice %7 {offsets = [0, 0], sizes = [14, 256], strides = [1, 1]} : vector<16x256xf32> to vector<14x256xf32>
    %24 = vector.shape_cast %22 : vector<256xf32> to vector<1x256xf32>
    %25 = vector.broadcast %24 : vector<1x256xf32> to vector<14x256xf32>
    %26 = arith.mulf %25, %23 : vector<14x256xf32>
    %27 = arith.addf %20, %26 : vector<14x256xf32>
    %c3 = arith.constant 3 : index
    %c0_7 = arith.constant 0 : index
    %28 = vector.load %arg1[%c3, %c0_7] : memref<38x256xf32, #tpu.memory_space<vmem>>, vector<1x256xf32>
    %29 = vector.shape_cast %28 : vector<1x256xf32> to vector<256xf32>
    %30 = vector.extract_strided_slice %1 {offsets = [1, 0], sizes = [14, 256], strides = [1, 1]} : vector<16x256xf32> to vector<14x256xf32>
    %31 = vector.shape_cast %29 : vector<256xf32> to vector<1x256xf32>
    %32 = vector.broadcast %31 : vector<1x256xf32> to vector<14x256xf32>
    %33 = arith.mulf %32, %30 : vector<14x256xf32>
    %34 = arith.addf %27, %33 : vector<14x256xf32>
    %c4 = arith.constant 4 : index
    %c0_8 = arith.constant 0 : index
    %35 = vector.load %arg1[%c4, %c0_8] : memref<38x256xf32, #tpu.memory_space<vmem>>, vector<1x256xf32>
    %36 = vector.shape_cast %35 : vector<1x256xf32> to vector<256xf32>
    %37 = vector.extract_strided_slice %4 {offsets = [1, 0], sizes = [14, 256], strides = [1, 1]} : vector<16x256xf32> to vector<14x256xf32>
    %38 = vector.shape_cast %36 : vector<256xf32> to vector<1x256xf32>
    %39 = vector.broadcast %38 : vector<1x256xf32> to vector<14x256xf32>
    %40 = arith.mulf %39, %37 : vector<14x256xf32>
    %41 = arith.addf %34, %40 : vector<14x256xf32>
    %c5 = arith.constant 5 : index
    %c0_9 = arith.constant 0 : index
    %42 = vector.load %arg1[%c5, %c0_9] : memref<38x256xf32, #tpu.memory_space<vmem>>, vector<1x256xf32>
    %43 = vector.shape_cast %42 : vector<1x256xf32> to vector<256xf32>
    %44 = vector.extract_strided_slice %7 {offsets = [1, 0], sizes = [14, 256], strides = [1, 1]} : vector<16x256xf32> to vector<14x256xf32>
    %45 = vector.shape_cast %43 : vector<256xf32> to vector<1x256xf32>
    %46 = vector.broadcast %45 : vector<1x256xf32> to vector<14x256xf32>
    %47 = arith.mulf %46, %44 : vector<14x256xf32>
    %48 = arith.addf %41, %47 : vector<14x256xf32>
    %c6 = arith.constant 6 : index
    %c0_10 = arith.constant 0 : index
    %49 = vector.load %arg1[%c6, %c0_10] : memref<38x256xf32, #tpu.memory_space<vmem>>, vector<1x256xf32>
    %50 = vector.shape_cast %49 : vector<1x256xf32> to vector<256xf32>
    %51 = vector.extract_strided_slice %1 {offsets = [2, 0], sizes = [14, 256], strides = [1, 1]} : vector<16x256xf32> to vector<14x256xf32>
    %52 = vector.shape_cast %50 : vector<256xf32> to vector<1x256xf32>
    %53 = vector.broadcast %52 : vector<1x256xf32> to vector<14x256xf32>
    %54 = arith.mulf %53, %51 : vector<14x256xf32>
    %55 = arith.addf %48, %54 : vector<14x256xf32>
    %c7 = arith.constant 7 : index
    %c0_11 = arith.constant 0 : index
    %56 = vector.load %arg1[%c7, %c0_11] : memref<38x256xf32, #tpu.memory_space<vmem>>, vector<1x256xf32>
    %57 = vector.shape_cast %56 : vector<1x256xf32> to vector<256xf32>
    %58 = vector.extract_strided_slice %4 {offsets = [2, 0], sizes = [14, 256], strides = [1, 1]} : vector<16x256xf32> to vector<14x256xf32>
    %59 = vector.shape_cast %57 : vector<256xf32> to vector<1x256xf32>
    %60 = vector.broadcast %59 : vector<1x256xf32> to vector<14x256xf32>
    %61 = arith.mulf %60, %58 : vector<14x256xf32>
    %62 = arith.addf %55, %61 : vector<14x256xf32>
    %c8 = arith.constant 8 : index
    %c0_12 = arith.constant 0 : index
    %63 = vector.load %arg1[%c8, %c0_12] : memref<38x256xf32, #tpu.memory_space<vmem>>, vector<1x256xf32>
    %64 = vector.shape_cast %63 : vector<1x256xf32> to vector<256xf32>
    %65 = vector.extract_strided_slice %7 {offsets = [2, 0], sizes = [14, 256], strides = [1, 1]} : vector<16x256xf32> to vector<14x256xf32>
    %66 = vector.shape_cast %64 : vector<256xf32> to vector<1x256xf32>
    %67 = vector.broadcast %66 : vector<1x256xf32> to vector<14x256xf32>
    %68 = arith.mulf %67, %65 : vector<14x256xf32>
    %69 = arith.addf %62, %68 : vector<14x256xf32>
    %c1_13 = arith.constant 1 : index
    %c0_14 = arith.constant 0 : index
    %c0_15 = arith.constant 0 : index
    %70 = vector.load %arg0[%c1_13, %c0_14, %c0_15] : memref<4x16x256xf32, #tpu.memory_space<vmem>>, vector<1x16x256xf32>
    %71 = vector.shape_cast %70 : vector<1x16x256xf32> to vector<16x256xf32>
    %72 = vector.extract_strided_slice %71 {offsets = [0, 1], sizes = [16, 255], strides = [1, 1]} : vector<16x256xf32> to vector<16x255xf32>
    %cst_16 = arith.constant 0.000000e+00 : f32
    %73 = vector.broadcast %cst_16 : f32 to vector<16x1xf32>
    %74 = tpu.concatenate %72, %73 in 1 : vector<16x255xf32>, vector<16x1xf32> -> vector<16x256xf32>
    %75 = vector.extract_strided_slice %71 {offsets = [0, 2], sizes = [16, 254], strides = [1, 1]} : vector<16x256xf32> to vector<16x254xf32>
    %cst_17 = arith.constant 0.000000e+00 : f32
    %76 = vector.broadcast %cst_17 : f32 to vector<16x2xf32>
    %77 = tpu.concatenate %75, %76 in 1 : vector<16x254xf32>, vector<16x2xf32> -> vector<16x256xf32>
    %c9 = arith.constant 9 : index
    %c0_18 = arith.constant 0 : index
    %78 = vector.load %arg1[%c9, %c0_18] : memref<38x256xf32, #tpu.memory_space<vmem>>, vector<1x256xf32>
    %79 = vector.shape_cast %78 : vector<1x256xf32> to vector<256xf32>
    %80 = vector.extract_strided_slice %71 {offsets = [0, 0], sizes = [14, 256], strides = [1, 1]} : vector<16x256xf32> to vector<14x256xf32>
    %81 = vector.shape_cast %79 : vector<256xf32> to vector<1x256xf32>
    %82 = vector.broadcast %81 : vector<1x256xf32> to vector<14x256xf32>
    %83 = arith.mulf %82, %80 : vector<14x256xf32>
    %c10 = arith.constant 10 : index
    %c0_19 = arith.constant 0 : index
    %84 = vector.load %arg1[%c10, %c0_19] : memref<38x256xf32, #tpu.memory_space<vmem>>, vector<1x256xf32>
    %85 = vector.shape_cast %84 : vector<1x256xf32> to vector<256xf32>
    %86 = vector.extract_strided_slice %74 {offsets = [0, 0], sizes = [14, 256], strides = [1, 1]} : vector<16x256xf32> to vector<14x256xf32>
    %87 = vector.shape_cast %85 : vector<256xf32> to vector<1x256xf32>
    %88 = vector.broadcast %87 : vector<1x256xf32> to vector<14x256xf32>
    %89 = arith.mulf %88, %86 : vector<14x256xf32>
    %90 = arith.addf %83, %89 : vector<14x256xf32>
    %c11 = arith.constant 11 : index
    %c0_20 = arith.constant 0 : index
    %91 = vector.load %arg1[%c11, %c0_20] : memref<38x256xf32, #tpu.memory_space<vmem>>, vector<1x256xf32>
    %92 = vector.shape_cast %91 : vector<1x256xf32> to vector<256xf32>
    %93 = vector.extract_strided_slice %77 {offsets = [0, 0], sizes = [14, 256], strides = [1, 1]} : vector<16x256xf32> to vector<14x256xf32>
    %94 = vector.shape_cast %92 : vector<256xf32> to vector<1x256xf32>
    %95 = vector.broadcast %94 : vector<1x256xf32> to vector<14x256xf32>
    %96 = arith.mulf %95, %93 : vector<14x256xf32>
    %97 = arith.addf %90, %96 : vector<14x256xf32>
    %c12 = arith.constant 12 : index
    %c0_21 = arith.constant 0 : index
    %98 = vector.load %arg1[%c12, %c0_21] : memref<38x256xf32, #tpu.memory_space<vmem>>, vector<1x256xf32>
    %99 = vector.shape_cast %98 : vector<1x256xf32> to vector<256xf32>
    %100 = vector.extract_strided_slice %71 {offsets = [1, 0], sizes = [14, 256], strides = [1, 1]} : vector<16x256xf32> to vector<14x256xf32>
    %101 = vector.shape_cast %99 : vector<256xf32> to vector<1x256xf32>
    %102 = vector.broadcast %101 : vector<1x256xf32> to vector<14x256xf32>
    %103 = arith.mulf %102, %100 : vector<14x256xf32>
    %104 = arith.addf %97, %103 : vector<14x256xf32>
    %c13 = arith.constant 13 : index
    %c0_22 = arith.constant 0 : index
    %105 = vector.load %arg1[%c13, %c0_22] : memref<38x256xf32, #tpu.memory_space<vmem>>, vector<1x256xf32>
    %106 = vector.shape_cast %105 : vector<1x256xf32> to vector<256xf32>
    %107 = vector.extract_strided_slice %74 {offsets = [1, 0], sizes = [14, 256], strides = [1, 1]} : vector<16x256xf32> to vector<14x256xf32>
    %108 = vector.shape_cast %106 : vector<256xf32> to vector<1x256xf32>
    %109 = vector.broadcast %108 : vector<1x256xf32> to vector<14x256xf32>
    %110 = arith.mulf %109, %107 : vector<14x256xf32>
    %111 = arith.addf %104, %110 : vector<14x256xf32>
    %c14 = arith.constant 14 : index
    %c0_23 = arith.constant 0 : index
    %112 = vector.load %arg1[%c14, %c0_23] : memref<38x256xf32, #tpu.memory_space<vmem>>, vector<1x256xf32>
    %113 = vector.shape_cast %112 : vector<1x256xf32> to vector<256xf32>
    %114 = vector.extract_strided_slice %77 {offsets = [1, 0], sizes = [14, 256], strides = [1, 1]} : vector<16x256xf32> to vector<14x256xf32>
    %115 = vector.shape_cast %113 : vector<256xf32> to vector<1x256xf32>
    %116 = vector.broadcast %115 : vector<1x256xf32> to vector<14x256xf32>
    %117 = arith.mulf %116, %114 : vector<14x256xf32>
    %118 = arith.addf %111, %117 : vector<14x256xf32>
    %c15 = arith.constant 15 : index
    %c0_24 = arith.constant 0 : index
    %119 = vector.load %arg1[%c15, %c0_24] : memref<38x256xf32, #tpu.memory_space<vmem>>, vector<1x256xf32>
    %120 = vector.shape_cast %119 : vector<1x256xf32> to vector<256xf32>
    %121 = vector.extract_strided_slice %71 {offsets = [2, 0], sizes = [14, 256], strides = [1, 1]} : vector<16x256xf32> to vector<14x256xf32>
    %122 = vector.shape_cast %120 : vector<256xf32> to vector<1x256xf32>
    %123 = vector.broadcast %122 : vector<1x256xf32> to vector<14x256xf32>
    %124 = arith.mulf %123, %121 : vector<14x256xf32>
    %125 = arith.addf %118, %124 : vector<14x256xf32>
    %c16 = arith.constant 16 : index
    %c0_25 = arith.constant 0 : index
    %126 = vector.load %arg1[%c16, %c0_25] : memref<38x256xf32, #tpu.memory_space<vmem>>, vector<1x256xf32>
    %127 = vector.shape_cast %126 : vector<1x256xf32> to vector<256xf32>
    %128 = vector.extract_strided_slice %74 {offsets = [2, 0], sizes = [14, 256], strides = [1, 1]} : vector<16x256xf32> to vector<14x256xf32>
    %129 = vector.shape_cast %127 : vector<256xf32> to vector<1x256xf32>
    %130 = vector.broadcast %129 : vector<1x256xf32> to vector<14x256xf32>
    %131 = arith.mulf %130, %128 : vector<14x256xf32>
    %132 = arith.addf %125, %131 : vector<14x256xf32>
    %c17 = arith.constant 17 : index
    %c0_26 = arith.constant 0 : index
    %133 = vector.load %arg1[%c17, %c0_26] : memref<38x256xf32, #tpu.memory_space<vmem>>, vector<1x256xf32>
    %134 = vector.shape_cast %133 : vector<1x256xf32> to vector<256xf32>
    %135 = vector.extract_strided_slice %77 {offsets = [2, 0], sizes = [14, 256], strides = [1, 1]} : vector<16x256xf32> to vector<14x256xf32>
    %136 = vector.shape_cast %134 : vector<256xf32> to vector<1x256xf32>
    %137 = vector.broadcast %136 : vector<1x256xf32> to vector<14x256xf32>
    %138 = arith.mulf %137, %135 : vector<14x256xf32>
    %139 = arith.addf %132, %138 : vector<14x256xf32>
    %c2_27 = arith.constant 2 : index
    %c0_28 = arith.constant 0 : index
    %c0_29 = arith.constant 0 : index
    %140 = vector.load %arg0[%c2_27, %c0_28, %c0_29] : memref<4x16x256xf32, #tpu.memory_space<vmem>>, vector<1x16x256xf32>
    %141 = vector.shape_cast %140 : vector<1x16x256xf32> to vector<16x256xf32>
    %142 = vector.extract_strided_slice %141 {offsets = [0, 1], sizes = [16, 255], strides = [1, 1]} : vector<16x256xf32> to vector<16x255xf32>
    %cst_30 = arith.constant 0.000000e+00 : f32
    %143 = vector.broadcast %cst_30 : f32 to vector<16x1xf32>
    %144 = tpu.concatenate %142, %143 in 1 : vector<16x255xf32>, vector<16x1xf32> -> vector<16x256xf32>
    %145 = vector.extract_strided_slice %141 {offsets = [0, 2], sizes = [16, 254], strides = [1, 1]} : vector<16x256xf32> to vector<16x254xf32>
    %cst_31 = arith.constant 0.000000e+00 : f32
    %146 = vector.broadcast %cst_31 : f32 to vector<16x2xf32>
    %147 = tpu.concatenate %145, %146 in 1 : vector<16x254xf32>, vector<16x2xf32> -> vector<16x256xf32>
    %c18 = arith.constant 18 : index
    %c0_32 = arith.constant 0 : index
    %148 = vector.load %arg1[%c18, %c0_32] : memref<38x256xf32, #tpu.memory_space<vmem>>, vector<1x256xf32>
    %149 = vector.shape_cast %148 : vector<1x256xf32> to vector<256xf32>
    %150 = vector.extract_strided_slice %141 {offsets = [0, 0], sizes = [14, 256], strides = [1, 1]} : vector<16x256xf32> to vector<14x256xf32>
    %151 = vector.shape_cast %149 : vector<256xf32> to vector<1x256xf32>
    %152 = vector.broadcast %151 : vector<1x256xf32> to vector<14x256xf32>
    %153 = arith.mulf %152, %150 : vector<14x256xf32>
    %c19 = arith.constant 19 : index
    %c0_33 = arith.constant 0 : index
    %154 = vector.load %arg1[%c19, %c0_33] : memref<38x256xf32, #tpu.memory_space<vmem>>, vector<1x256xf32>
    %155 = vector.shape_cast %154 : vector<1x256xf32> to vector<256xf32>
    %156 = vector.extract_strided_slice %144 {offsets = [0, 0], sizes = [14, 256], strides = [1, 1]} : vector<16x256xf32> to vector<14x256xf32>
    %157 = vector.shape_cast %155 : vector<256xf32> to vector<1x256xf32>
    %158 = vector.broadcast %157 : vector<1x256xf32> to vector<14x256xf32>
    %159 = arith.mulf %158, %156 : vector<14x256xf32>
    %160 = arith.addf %153, %159 : vector<14x256xf32>
    %c20 = arith.constant 20 : index
    %c0_34 = arith.constant 0 : index
    %161 = vector.load %arg1[%c20, %c0_34] : memref<38x256xf32, #tpu.memory_space<vmem>>, vector<1x256xf32>
    %162 = vector.shape_cast %161 : vector<1x256xf32> to vector<256xf32>
    %163 = vector.extract_strided_slice %147 {offsets = [0, 0], sizes = [14, 256], strides = [1, 1]} : vector<16x256xf32> to vector<14x256xf32>
    %164 = vector.shape_cast %162 : vector<256xf32> to vector<1x256xf32>
    %165 = vector.broadcast %164 : vector<1x256xf32> to vector<14x256xf32>
    %166 = arith.mulf %165, %163 : vector<14x256xf32>
    %167 = arith.addf %160, %166 : vector<14x256xf32>
    %c21 = arith.constant 21 : index
    %c0_35 = arith.constant 0 : index
    %168 = vector.load %arg1[%c21, %c0_35] : memref<38x256xf32, #tpu.memory_space<vmem>>, vector<1x256xf32>
    %169 = vector.shape_cast %168 : vector<1x256xf32> to vector<256xf32>
    %170 = vector.extract_strided_slice %141 {offsets = [1, 0], sizes = [14, 256], strides = [1, 1]} : vector<16x256xf32> to vector<14x256xf32>
    %171 = vector.shape_cast %169 : vector<256xf32> to vector<1x256xf32>
    %172 = vector.broadcast %171 : vector<1x256xf32> to vector<14x256xf32>
    %173 = arith.mulf %172, %170 : vector<14x256xf32>
    %174 = arith.addf %167, %173 : vector<14x256xf32>
    %c22 = arith.constant 22 : index
    %c0_36 = arith.constant 0 : index
    %175 = vector.load %arg1[%c22, %c0_36] : memref<38x256xf32, #tpu.memory_space<vmem>>, vector<1x256xf32>
    %176 = vector.shape_cast %175 : vector<1x256xf32> to vector<256xf32>
    %177 = vector.extract_strided_slice %144 {offsets = [1, 0], sizes = [14, 256], strides = [1, 1]} : vector<16x256xf32> to vector<14x256xf32>
    %178 = vector.shape_cast %176 : vector<256xf32> to vector<1x256xf32>
    %179 = vector.broadcast %178 : vector<1x256xf32> to vector<14x256xf32>
    %180 = arith.mulf %179, %177 : vector<14x256xf32>
    %181 = arith.addf %174, %180 : vector<14x256xf32>
    %c23 = arith.constant 23 : index
    %c0_37 = arith.constant 0 : index
    %182 = vector.load %arg1[%c23, %c0_37] : memref<38x256xf32, #tpu.memory_space<vmem>>, vector<1x256xf32>
    %183 = vector.shape_cast %182 : vector<1x256xf32> to vector<256xf32>
    %184 = vector.extract_strided_slice %147 {offsets = [1, 0], sizes = [14, 256], strides = [1, 1]} : vector<16x256xf32> to vector<14x256xf32>
    %185 = vector.shape_cast %183 : vector<256xf32> to vector<1x256xf32>
    %186 = vector.broadcast %185 : vector<1x256xf32> to vector<14x256xf32>
    %187 = arith.mulf %186, %184 : vector<14x256xf32>
    %188 = arith.addf %181, %187 : vector<14x256xf32>
    %c24 = arith.constant 24 : index
    %c0_38 = arith.constant 0 : index
    %189 = vector.load %arg1[%c24, %c0_38] : memref<38x256xf32, #tpu.memory_space<vmem>>, vector<1x256xf32>
    %190 = vector.shape_cast %189 : vector<1x256xf32> to vector<256xf32>
    %191 = vector.extract_strided_slice %141 {offsets = [2, 0], sizes = [14, 256], strides = [1, 1]} : vector<16x256xf32> to vector<14x256xf32>
    %192 = vector.shape_cast %190 : vector<256xf32> to vector<1x256xf32>
    %193 = vector.broadcast %192 : vector<1x256xf32> to vector<14x256xf32>
    %194 = arith.mulf %193, %191 : vector<14x256xf32>
    %195 = arith.addf %188, %194 : vector<14x256xf32>
    %c25 = arith.constant 25 : index
    %c0_39 = arith.constant 0 : index
    %196 = vector.load %arg1[%c25, %c0_39] : memref<38x256xf32, #tpu.memory_space<vmem>>, vector<1x256xf32>
    %197 = vector.shape_cast %196 : vector<1x256xf32> to vector<256xf32>
    %198 = vector.extract_strided_slice %144 {offsets = [2, 0], sizes = [14, 256], strides = [1, 1]} : vector<16x256xf32> to vector<14x256xf32>
    %199 = vector.shape_cast %197 : vector<256xf32> to vector<1x256xf32>
    %200 = vector.broadcast %199 : vector<1x256xf32> to vector<14x256xf32>
    %201 = arith.mulf %200, %198 : vector<14x256xf32>
    %202 = arith.addf %195, %201 : vector<14x256xf32>
    %c26 = arith.constant 26 : index
    %c0_40 = arith.constant 0 : index
    %203 = vector.load %arg1[%c26, %c0_40] : memref<38x256xf32, #tpu.memory_space<vmem>>, vector<1x256xf32>
    %204 = vector.shape_cast %203 : vector<1x256xf32> to vector<256xf32>
    %205 = vector.extract_strided_slice %147 {offsets = [2, 0], sizes = [14, 256], strides = [1, 1]} : vector<16x256xf32> to vector<14x256xf32>
    %206 = vector.shape_cast %204 : vector<256xf32> to vector<1x256xf32>
    %207 = vector.broadcast %206 : vector<1x256xf32> to vector<14x256xf32>
    %208 = arith.mulf %207, %205 : vector<14x256xf32>
    %209 = arith.addf %202, %208 : vector<14x256xf32>
    %c3_41 = arith.constant 3 : index
    %c0_42 = arith.constant 0 : index
    %c0_43 = arith.constant 0 : index
    %210 = vector.load %arg0[%c3_41, %c0_42, %c0_43] : memref<4x16x256xf32, #tpu.memory_space<vmem>>, vector<1x16x256xf32>
    %211 = vector.shape_cast %210 : vector<1x16x256xf32> to vector<16x256xf32>
    %212 = vector.extract_strided_slice %211 {offsets = [0, 1], sizes = [16, 255], strides = [1, 1]} : vector<16x256xf32> to vector<16x255xf32>
    %cst_44 = arith.constant 0.000000e+00 : f32
    %213 = vector.broadcast %cst_44 : f32 to vector<16x1xf32>
    %214 = tpu.concatenate %212, %213 in 1 : vector<16x255xf32>, vector<16x1xf32> -> vector<16x256xf32>
    %215 = vector.extract_strided_slice %211 {offsets = [0, 2], sizes = [16, 254], strides = [1, 1]} : vector<16x256xf32> to vector<16x254xf32>
    %cst_45 = arith.constant 0.000000e+00 : f32
    %216 = vector.broadcast %cst_45 : f32 to vector<16x2xf32>
    %217 = tpu.concatenate %215, %216 in 1 : vector<16x254xf32>, vector<16x2xf32> -> vector<16x256xf32>
    %c27 = arith.constant 27 : index
    %c0_46 = arith.constant 0 : index
    %218 = vector.load %arg1[%c27, %c0_46] : memref<38x256xf32, #tpu.memory_space<vmem>>, vector<1x256xf32>
    %219 = vector.shape_cast %218 : vector<1x256xf32> to vector<256xf32>
    %220 = vector.extract_strided_slice %211 {offsets = [0, 0], sizes = [14, 256], strides = [1, 1]} : vector<16x256xf32> to vector<14x256xf32>
    %221 = vector.shape_cast %219 : vector<256xf32> to vector<1x256xf32>
    %222 = vector.broadcast %221 : vector<1x256xf32> to vector<14x256xf32>
    %223 = arith.mulf %222, %220 : vector<14x256xf32>
    %c28 = arith.constant 28 : index
    %c0_47 = arith.constant 0 : index
    %224 = vector.load %arg1[%c28, %c0_47] : memref<38x256xf32, #tpu.memory_space<vmem>>, vector<1x256xf32>
    %225 = vector.shape_cast %224 : vector<1x256xf32> to vector<256xf32>
    %226 = vector.extract_strided_slice %214 {offsets = [0, 0], sizes = [14, 256], strides = [1, 1]} : vector<16x256xf32> to vector<14x256xf32>
    %227 = vector.shape_cast %225 : vector<256xf32> to vector<1x256xf32>
    %228 = vector.broadcast %227 : vector<1x256xf32> to vector<14x256xf32>
    %229 = arith.mulf %228, %226 : vector<14x256xf32>
    %230 = arith.addf %223, %229 : vector<14x256xf32>
    %c29 = arith.constant 29 : index
    %c0_48 = arith.constant 0 : index
    %231 = vector.load %arg1[%c29, %c0_48] : memref<38x256xf32, #tpu.memory_space<vmem>>, vector<1x256xf32>
    %232 = vector.shape_cast %231 : vector<1x256xf32> to vector<256xf32>
    %233 = vector.extract_strided_slice %217 {offsets = [0, 0], sizes = [14, 256], strides = [1, 1]} : vector<16x256xf32> to vector<14x256xf32>
    %234 = vector.shape_cast %232 : vector<256xf32> to vector<1x256xf32>
    %235 = vector.broadcast %234 : vector<1x256xf32> to vector<14x256xf32>
    %236 = arith.mulf %235, %233 : vector<14x256xf32>
    %237 = arith.addf %230, %236 : vector<14x256xf32>
    %c30 = arith.constant 30 : index
    %c0_49 = arith.constant 0 : index
    %238 = vector.load %arg1[%c30, %c0_49] : memref<38x256xf32, #tpu.memory_space<vmem>>, vector<1x256xf32>
    %239 = vector.shape_cast %238 : vector<1x256xf32> to vector<256xf32>
    %240 = vector.extract_strided_slice %211 {offsets = [1, 0], sizes = [14, 256], strides = [1, 1]} : vector<16x256xf32> to vector<14x256xf32>
    %241 = vector.shape_cast %239 : vector<256xf32> to vector<1x256xf32>
    %242 = vector.broadcast %241 : vector<1x256xf32> to vector<14x256xf32>
    %243 = arith.mulf %242, %240 : vector<14x256xf32>
    %244 = arith.addf %237, %243 : vector<14x256xf32>
    %c31 = arith.constant 31 : index
    %c0_50 = arith.constant 0 : index
    %245 = vector.load %arg1[%c31, %c0_50] : memref<38x256xf32, #tpu.memory_space<vmem>>, vector<1x256xf32>
    %246 = vector.shape_cast %245 : vector<1x256xf32> to vector<256xf32>
    %247 = vector.extract_strided_slice %214 {offsets = [1, 0], sizes = [14, 256], strides = [1, 1]} : vector<16x256xf32> to vector<14x256xf32>
    %248 = vector.shape_cast %246 : vector<256xf32> to vector<1x256xf32>
    %249 = vector.broadcast %248 : vector<1x256xf32> to vector<14x256xf32>
    %250 = arith.mulf %249, %247 : vector<14x256xf32>
    %251 = arith.addf %244, %250 : vector<14x256xf32>
    %c32 = arith.constant 32 : index
    %c0_51 = arith.constant 0 : index
    %252 = vector.load %arg1[%c32, %c0_51] : memref<38x256xf32, #tpu.memory_space<vmem>>, vector<1x256xf32>
    %253 = vector.shape_cast %252 : vector<1x256xf32> to vector<256xf32>
    %254 = vector.extract_strided_slice %217 {offsets = [1, 0], sizes = [14, 256], strides = [1, 1]} : vector<16x256xf32> to vector<14x256xf32>
    %255 = vector.shape_cast %253 : vector<256xf32> to vector<1x256xf32>
    %256 = vector.broadcast %255 : vector<1x256xf32> to vector<14x256xf32>
    %257 = arith.mulf %256, %254 : vector<14x256xf32>
    %258 = arith.addf %251, %257 : vector<14x256xf32>
    %c33 = arith.constant 33 : index
    %c0_52 = arith.constant 0 : index
    %259 = vector.load %arg1[%c33, %c0_52] : memref<38x256xf32, #tpu.memory_space<vmem>>, vector<1x256xf32>
    %260 = vector.shape_cast %259 : vector<1x256xf32> to vector<256xf32>
    %261 = vector.extract_strided_slice %211 {offsets = [2, 0], sizes = [14, 256], strides = [1, 1]} : vector<16x256xf32> to vector<14x256xf32>
    %262 = vector.shape_cast %260 : vector<256xf32> to vector<1x256xf32>
    %263 = vector.broadcast %262 : vector<1x256xf32> to vector<14x256xf32>
    %264 = arith.mulf %263, %261 : vector<14x256xf32>
    %265 = arith.addf %258, %264 : vector<14x256xf32>
    %c34 = arith.constant 34 : index
    %c0_53 = arith.constant 0 : index
    %266 = vector.load %arg1[%c34, %c0_53] : memref<38x256xf32, #tpu.memory_space<vmem>>, vector<1x256xf32>
    %267 = vector.shape_cast %266 : vector<1x256xf32> to vector<256xf32>
    %268 = vector.extract_strided_slice %214 {offsets = [2, 0], sizes = [14, 256], strides = [1, 1]} : vector<16x256xf32> to vector<14x256xf32>
    %269 = vector.shape_cast %267 : vector<256xf32> to vector<1x256xf32>
    %270 = vector.broadcast %269 : vector<1x256xf32> to vector<14x256xf32>
    %271 = arith.mulf %270, %268 : vector<14x256xf32>
    %272 = arith.addf %265, %271 : vector<14x256xf32>
    %c35 = arith.constant 35 : index
    %c0_54 = arith.constant 0 : index
    %273 = vector.load %arg1[%c35, %c0_54] : memref<38x256xf32, #tpu.memory_space<vmem>>, vector<1x256xf32>
    %274 = vector.shape_cast %273 : vector<1x256xf32> to vector<256xf32>
    %275 = vector.extract_strided_slice %217 {offsets = [2, 0], sizes = [14, 256], strides = [1, 1]} : vector<16x256xf32> to vector<14x256xf32>
    %276 = vector.shape_cast %274 : vector<256xf32> to vector<1x256xf32>
    %277 = vector.broadcast %276 : vector<1x256xf32> to vector<14x256xf32>
    %278 = arith.mulf %277, %275 : vector<14x256xf32>
    %279 = arith.addf %272, %278 : vector<14x256xf32>
    %280 = arith.addf %69, %139 : vector<14x256xf32>
    %281 = arith.addf %280, %209 : vector<14x256xf32>
    %282 = arith.addf %281, %279 : vector<14x256xf32>
    %c36 = arith.constant 36 : index
    %c0_55 = arith.constant 0 : index
    %283 = vector.load %arg1[%c36, %c0_55] : memref<38x256xf32, #tpu.memory_space<vmem>>, vector<1x256xf32>
    %284 = vector.shape_cast %283 : vector<1x256xf32> to vector<256xf32>
    %285 = vector.shape_cast %284 : vector<256xf32> to vector<1x256xf32>
    %286 = vector.broadcast %285 : vector<1x256xf32> to vector<14x256xf32>
    %287 = arith.addf %282, %286 : vector<14x256xf32>
    %c37 = arith.constant 37 : index
    %c0_56 = arith.constant 0 : index
    %288 = vector.load %arg1[%c37, %c0_56] : memref<38x256xf32, #tpu.memory_space<vmem>>, vector<1x256xf32>
    %289 = vector.shape_cast %288 : vector<1x256xf32> to vector<256xf32>
    %290 = vector.shape_cast %289 : vector<256xf32> to vector<1x256xf32>
    %291 = vector.broadcast %290 : vector<1x256xf32> to vector<14x256xf32>
    %292 = arith.mulf %287, %291 : vector<14x256xf32>
    %cst_57 = arith.constant 0.000000e+00 : f32
    %293 = vector.broadcast %cst_57 : f32 to vector<3x256xf32>
    %294 = tpu.concatenate %293, %292, %293 in 0 : vector<3x256xf32>, vector<14x256xf32>, vector<3x256xf32> -> vector<20x256xf32>
    %295 = vector.extract_strided_slice %294 {offsets = [0, 1], sizes = [20, 255], strides = [1, 1]} : vector<20x256xf32> to vector<20x255xf32>
    %cst_58 = arith.constant 0.000000e+00 : f32
    %296 = vector.broadcast %cst_58 : f32 to vector<20x1xf32>
    %297 = tpu.concatenate %295, %296 in 1 : vector<20x255xf32>, vector<20x1xf32> -> vector<20x256xf32>
    %298 = vector.extract_strided_slice %294 {offsets = [0, 2], sizes = [20, 254], strides = [1, 1]} : vector<20x256xf32> to vector<20x254xf32>
    %cst_59 = arith.constant 0.000000e+00 : f32
    %299 = vector.broadcast %cst_59 : f32 to vector<20x2xf32>
    %300 = tpu.concatenate %298, %299 in 1 : vector<20x254xf32>, vector<20x2xf32> -> vector<20x256xf32>
    %cst_60 = arith.constant 2.500000e-01 : f32
    %301 = vector.broadcast %cst_60 : f32 to vector<20x256xf32>
    %302 = arith.mulf %301, %294 : vector<20x256xf32>
    %cst_61 = arith.constant 7.500000e-01 : f32
    %303 = vector.broadcast %cst_61 : f32 to vector<20x256xf32>
    %304 = arith.mulf %303, %297 : vector<20x256xf32>
    %305 = arith.addf %302, %304 : vector<20x256xf32>
    %cst_62 = arith.constant 7.500000e-01 : f32
    %306 = vector.broadcast %cst_62 : f32 to vector<20x256xf32>
    %307 = arith.mulf %306, %297 : vector<20x256xf32>
    %cst_63 = arith.constant 2.500000e-01 : f32
    %308 = vector.broadcast %cst_63 : f32 to vector<20x256xf32>
    %309 = arith.mulf %308, %300 : vector<20x256xf32>
    %310 = arith.addf %307, %309 : vector<20x256xf32>
    %311 = vector.extract_strided_slice %305 {offsets = [0, 0], sizes = [18, 256], strides = [1, 1]} : vector<20x256xf32> to vector<18x256xf32>
    %cst_64 = arith.constant 2.500000e-01 : f32
    %312 = vector.broadcast %cst_64 : f32 to vector<18x256xf32>
    %313 = arith.mulf %312, %311 : vector<18x256xf32>
    %314 = vector.extract_strided_slice %305 {offsets = [1, 0], sizes = [18, 256], strides = [1, 1]} : vector<20x256xf32> to vector<18x256xf32>
    %cst_65 = arith.constant 7.500000e-01 : f32
    %315 = vector.broadcast %cst_65 : f32 to vector<18x256xf32>
    %316 = arith.mulf %315, %314 : vector<18x256xf32>
    %317 = arith.addf %313, %316 : vector<18x256xf32>
    %cst_66 = arith.constant 0.000000e+00 : f32
    %318 = vector.broadcast %cst_66 : f32 to vector<18x256xf32>
    %319 = arith.cmpf oge, %317, %318 : vector<18x256xf32>
    %cst_67 = arith.constant 2.000000e-01 : f32
    %320 = vector.broadcast %cst_67 : f32 to vector<18x256xf32>
    %321 = arith.mulf %317, %320 : vector<18x256xf32>
    %322 = arith.select %319, %317, %321 : vector<18x256xi1>, vector<18x256xf32>
    %323 = vector.extract_strided_slice %310 {offsets = [0, 0], sizes = [18, 256], strides = [1, 1]} : vector<20x256xf32> to vector<18x256xf32>
    %cst_68 = arith.constant 2.500000e-01 : f32
    %324 = vector.broadcast %cst_68 : f32 to vector<18x256xf32>
    %325 = arith.mulf %324, %323 : vector<18x256xf32>
    %326 = vector.extract_strided_slice %310 {offsets = [1, 0], sizes = [18, 256], strides = [1, 1]} : vector<20x256xf32> to vector<18x256xf32>
    %cst_69 = arith.constant 7.500000e-01 : f32
    %327 = vector.broadcast %cst_69 : f32 to vector<18x256xf32>
    %328 = arith.mulf %327, %326 : vector<18x256xf32>
    %329 = arith.addf %325, %328 : vector<18x256xf32>
    %cst_70 = arith.constant 0.000000e+00 : f32
    %330 = vector.broadcast %cst_70 : f32 to vector<18x256xf32>
    %331 = arith.cmpf oge, %329, %330 : vector<18x256xf32>
    %cst_71 = arith.constant 2.000000e-01 : f32
    %332 = vector.broadcast %cst_71 : f32 to vector<18x256xf32>
    %333 = arith.mulf %329, %332 : vector<18x256xf32>
    %334 = arith.select %331, %329, %333 : vector<18x256xi1>, vector<18x256xf32>
    %cst_72 = arith.constant 0.176776692 : f32
    %335 = vector.broadcast %cst_72 : f32 to vector<18x256xf32>
    %336 = arith.mulf %335, %334 : vector<18x256xf32>
    %337 = vector.extract_strided_slice %322 {offsets = [0, 1], sizes = [18, 255], strides = [1, 1]} : vector<18x256xf32> to vector<18x255xf32>
    %cst_73 = arith.constant 0.000000e+00 : f32
    %338 = vector.broadcast %cst_73 : f32 to vector<18x1xf32>
    %339 = tpu.concatenate %337, %338 in 1 : vector<18x255xf32>, vector<18x1xf32> -> vector<18x256xf32>
    %cst_74 = arith.constant 0.530330062 : f32
    %340 = vector.broadcast %cst_74 : f32 to vector<18x256xf32>
    %341 = arith.mulf %340, %339 : vector<18x256xf32>
    %342 = arith.addf %336, %341 : vector<18x256xf32>
    %343 = vector.extract_strided_slice %334 {offsets = [0, 1], sizes = [18, 255], strides = [1, 1]} : vector<18x256xf32> to vector<18x255xf32>
    %cst_75 = arith.constant 0.000000e+00 : f32
    %344 = vector.broadcast %cst_75 : f32 to vector<18x1xf32>
    %345 = tpu.concatenate %343, %344 in 1 : vector<18x255xf32>, vector<18x1xf32> -> vector<18x256xf32>
    %cst_76 = arith.constant 0.530330062 : f32
    %346 = vector.broadcast %cst_76 : f32 to vector<18x256xf32>
    %347 = arith.mulf %346, %345 : vector<18x256xf32>
    %348 = arith.addf %342, %347 : vector<18x256xf32>
    %349 = vector.extract_strided_slice %322 {offsets = [0, 2], sizes = [18, 254], strides = [1, 1]} : vector<18x256xf32> to vector<18x254xf32>
    %cst_77 = arith.constant 0.000000e+00 : f32
    %350 = vector.broadcast %cst_77 : f32 to vector<18x2xf32>
    %351 = tpu.concatenate %349, %350 in 1 : vector<18x254xf32>, vector<18x2xf32> -> vector<18x256xf32>
    %cst_78 = arith.constant 0.176776692 : f32
    %352 = vector.broadcast %cst_78 : f32 to vector<18x256xf32>
    %353 = arith.mulf %352, %351 : vector<18x256xf32>
    %354 = arith.addf %348, %353 : vector<18x256xf32>
    %355 = vector.extract_strided_slice %305 {offsets = [1, 0], sizes = [18, 256], strides = [1, 1]} : vector<20x256xf32> to vector<18x256xf32>
    %cst_79 = arith.constant 7.500000e-01 : f32
    %356 = vector.broadcast %cst_79 : f32 to vector<18x256xf32>
    %357 = arith.mulf %356, %355 : vector<18x256xf32>
    %358 = vector.extract_strided_slice %305 {offsets = [2, 0], sizes = [18, 256], strides = [1, 1]} : vector<20x256xf32> to vector<18x256xf32>
    %cst_80 = arith.constant 2.500000e-01 : f32
    %359 = vector.broadcast %cst_80 : f32 to vector<18x256xf32>
    %360 = arith.mulf %359, %358 : vector<18x256xf32>
    %361 = arith.addf %357, %360 : vector<18x256xf32>
    %cst_81 = arith.constant 0.000000e+00 : f32
    %362 = vector.broadcast %cst_81 : f32 to vector<18x256xf32>
    %363 = arith.cmpf oge, %361, %362 : vector<18x256xf32>
    %cst_82 = arith.constant 2.000000e-01 : f32
    %364 = vector.broadcast %cst_82 : f32 to vector<18x256xf32>
    %365 = arith.mulf %361, %364 : vector<18x256xf32>
    %366 = arith.select %363, %361, %365 : vector<18x256xi1>, vector<18x256xf32>
    %367 = vector.extract_strided_slice %310 {offsets = [1, 0], sizes = [18, 256], strides = [1, 1]} : vector<20x256xf32> to vector<18x256xf32>
    %cst_83 = arith.constant 7.500000e-01 : f32
    %368 = vector.broadcast %cst_83 : f32 to vector<18x256xf32>
    %369 = arith.mulf %368, %367 : vector<18x256xf32>
    %370 = vector.extract_strided_slice %310 {offsets = [2, 0], sizes = [18, 256], strides = [1, 1]} : vector<20x256xf32> to vector<18x256xf32>
    %cst_84 = arith.constant 2.500000e-01 : f32
    %371 = vector.broadcast %cst_84 : f32 to vector<18x256xf32>
    %372 = arith.mulf %371, %370 : vector<18x256xf32>
    %373 = arith.addf %369, %372 : vector<18x256xf32>
    %cst_85 = arith.constant 0.000000e+00 : f32
    %374 = vector.broadcast %cst_85 : f32 to vector<18x256xf32>
    %375 = arith.cmpf oge, %373, %374 : vector<18x256xf32>
    %cst_86 = arith.constant 2.000000e-01 : f32
    %376 = vector.broadcast %cst_86 : f32 to vector<18x256xf32>
    %377 = arith.mulf %373, %376 : vector<18x256xf32>
    %378 = arith.select %375, %373, %377 : vector<18x256xi1>, vector<18x256xf32>
    %cst_87 = arith.constant 0.176776692 : f32
    %379 = vector.broadcast %cst_87 : f32 to vector<18x256xf32>
    %380 = arith.mulf %379, %378 : vector<18x256xf32>
    %381 = vector.extract_strided_slice %366 {offsets = [0, 1], sizes = [18, 255], strides = [1, 1]} : vector<18x256xf32> to vector<18x255xf32>
    %cst_88 = arith.constant 0.000000e+00 : f32
    %382 = vector.broadcast %cst_88 : f32 to vector<18x1xf32>
    %383 = tpu.concatenate %381, %382 in 1 : vector<18x255xf32>, vector<18x1xf32> -> vector<18x256xf32>
    %cst_89 = arith.constant 0.530330062 : f32
    %384 = vector.broadcast %cst_89 : f32 to vector<18x256xf32>
    %385 = arith.mulf %384, %383 : vector<18x256xf32>
    %386 = arith.addf %380, %385 : vector<18x256xf32>
    %387 = vector.extract_strided_slice %378 {offsets = [0, 1], sizes = [18, 255], strides = [1, 1]} : vector<18x256xf32> to vector<18x255xf32>
    %cst_90 = arith.constant 0.000000e+00 : f32
    %388 = vector.broadcast %cst_90 : f32 to vector<18x1xf32>
    %389 = tpu.concatenate %387, %388 in 1 : vector<18x255xf32>, vector<18x1xf32> -> vector<18x256xf32>
    %cst_91 = arith.constant 0.530330062 : f32
    %390 = vector.broadcast %cst_91 : f32 to vector<18x256xf32>
    %391 = arith.mulf %390, %389 : vector<18x256xf32>
    %392 = arith.addf %386, %391 : vector<18x256xf32>
    %393 = vector.extract_strided_slice %366 {offsets = [0, 2], sizes = [18, 254], strides = [1, 1]} : vector<18x256xf32> to vector<18x254xf32>
    %cst_92 = arith.constant 0.000000e+00 : f32
    %394 = vector.broadcast %cst_92 : f32 to vector<18x2xf32>
    %395 = tpu.concatenate %393, %394 in 1 : vector<18x254xf32>, vector<18x2xf32> -> vector<18x256xf32>
    %cst_93 = arith.constant 0.176776692 : f32
    %396 = vector.broadcast %cst_93 : f32 to vector<18x256xf32>
    %397 = arith.mulf %396, %395 : vector<18x256xf32>
    %398 = arith.addf %392, %397 : vector<18x256xf32>
    %399 = vector.extract_strided_slice %398 {offsets = [0, 0], sizes = [16, 256], strides = [1, 1]} : vector<18x256xf32> to vector<16x256xf32>
    %cst_94 = arith.constant 1.250000e-01 : f32
    %400 = vector.broadcast %cst_94 : f32 to vector<16x256xf32>
    %401 = arith.mulf %400, %399 : vector<16x256xf32>
    %402 = vector.extract_strided_slice %354 {offsets = [1, 0], sizes = [16, 256], strides = [1, 1]} : vector<18x256xf32> to vector<16x256xf32>
    %cst_95 = arith.constant 3.750000e-01 : f32
    %403 = vector.broadcast %cst_95 : f32 to vector<16x256xf32>
    %404 = arith.mulf %403, %402 : vector<16x256xf32>
    %405 = arith.addf %401, %404 : vector<16x256xf32>
    %406 = vector.extract_strided_slice %398 {offsets = [1, 0], sizes = [16, 256], strides = [1, 1]} : vector<18x256xf32> to vector<16x256xf32>
    %cst_96 = arith.constant 3.750000e-01 : f32
    %407 = vector.broadcast %cst_96 : f32 to vector<16x256xf32>
    %408 = arith.mulf %407, %406 : vector<16x256xf32>
    %409 = arith.addf %405, %408 : vector<16x256xf32>
    %410 = vector.extract_strided_slice %354 {offsets = [2, 0], sizes = [16, 256], strides = [1, 1]} : vector<18x256xf32> to vector<16x256xf32>
    %cst_97 = arith.constant 1.250000e-01 : f32
    %411 = vector.broadcast %cst_97 : f32 to vector<16x256xf32>
    %412 = arith.mulf %411, %410 : vector<16x256xf32>
    %413 = arith.addf %409, %412 : vector<16x256xf32>
    %c0_98 = arith.constant 0 : index
    %c0_99 = arith.constant 0 : index
    %414 = vector.load %arg2[%c0_98, %c0_99] : memref<16x256xf32, #tpu.memory_space<vmem>>, vector<16x256xf32>
    tpu.vector_store %arg2[%c0_98, %c0_99], %413 {strides = array<i32>} : memref<16x256xf32, #tpu.memory_space<vmem>>, vector<16x256xf32>,
    return
  }
}

</mosaic_0001>

<llo_original>
// kernel: alias_free_conv.1
$region0: #{alias_free_conv.1}
  #allocation0 [shape = 'u32[]', space=smem, size = 0x4, offset = 0x4, fixed_abs, tag = 'smem constant byte address 0x4 - core index']
  #allocation1 [shape = 'u32[144,128]{1,0:T(1,128)}', space=vmem, size = 0x12000, scoped, tag = 'internal scratch']
  %s0 = inlined_call_operand.vmem [shape: f32[4,16,256], index: 0, kind: input, shape index: {}]
  %s1 = inlined_call_operand.vmem [shape: f32[38,256], index: 1, kind: input, shape index: {}]
  %s2 = inlined_call_operand.vmem [shape: f32[16,256], index: 2, kind: output, shape index: {}]
  %s3 = sld [smem:[#allocation0]]
  $region18: #{alias_free_conv.1} parent=0
    _
  %s5 = ssub.s32 1, %s3
  %s6 = scalar_select 0, %s5, %s3
  // Predicated region
  $region2: #{alias_free_conv.1} parent=0 // pred_check
    _
  $region3: #{alias_free_conv.1} parent=0 // pred_check_branch
    %8 = sbr.rel (0) target = $region5
  $region4: #{alias_free_conv.1} parent=0 // pred_region
    _
  $region5: #{alias_free_conv.1} parent=0 // pred_fallthru
    _
  // Predicated region
  $region6: #{alias_free_conv.1} parent=0 // pred_check
    _
  $region7: #{alias_free_conv.1} parent=0 // pred_check_branch
    %10 = sbr.rel (0) target = $region9
  $region8: #{alias_free_conv.1} parent=0 // pred_region
    _
  $region9: #{alias_free_conv.1} parent=0 // pred_fallthru
    _
  %v11 = vld [vmem:[%s0] sm:$0xff]
  %v12 = vld [vmem:[%s0 + $0x8] sm:$0xff]
  %v13 = vld [vmem:[%s0 + $0x10] sm:$0xff]
  %v14 = vld [vmem:[%s0 + $0x18] sm:$0xff]
  %19 = vrot.lane.b32.xlu0 %v11, 127
  %v20 = vpop.permute.xlu0 %19
  %21 = vrot.lane.b32.xlu0 %v12, 127
  %v22 = vpop.permute.xlu0 %21
  %23 = vrot.lane.b32.xlu0 %v13, 127
  %v24 = vpop.permute.xlu0 %23
  %25 = vrot.lane.b32.xlu0 %v14, 127
  %v26 = vpop.permute.xlu0 %25
  %vm27 = vcmask 1039360
  %v28 = vsel %vm27, %v20, %v22
  %v29 = vsel %vm27, %v24, %v26
  %v34 = vsel %vm27, %v22, 0.0
  %v35 = vsel %vm27, %v26, 0.0
  %36 = vrot.lane.b32.xlu0 %v11, 126
  %v37 = vpop.permute.xlu0 %36
  %38 = vrot.lane.b32.xlu0 %v12, 126
  %v39 = vpop.permute.xlu0 %38
  %40 = vrot.lane.b32.xlu0 %v13, 126
  %v41 = vpop.permute.xlu0 %40
  %42 = vrot.lane.b32.xlu0 %v14, 126
  %v43 = vpop.permute.xlu0 %42
  %vm44 = vcmask 1031168
  %v45 = vsel %vm44, %v37, %v39
  %v46 = vsel %vm44, %v41, %v43
  %v51 = vsel %vm44, %v39, 0.0
  %v52 = vsel %vm44, %v43, 0.0
  %v53 = vld [vmem:[%s1] ss:$8 sm:$0x3]
  %v55 = vlaneseq
  %v56 = vshrl.u32 %v55, 7
  %v57 = vsub.s32 0, %v56
  %v58 = vrot.slane %v53, %v57
  %v59 = vlaneseq
  %v60 = vshrl.u32 %v59, 7
  %v61 = vsub.s32 1, %v60
  %v62 = vrot.slane %v53, %v61
  %v65 = vmul.f32 %v58, %v11
  %v66 = vmul.f32 %v62, %v12
  %v67 = vmul.f32 %v58, %v13
  %v68 = vmul.f32 %v62, %v14
  %s69 = scalar_lea.vmem %s1, 1
  %v70 = vld [vmem:[%s69] ss:$8 sm:$0x3]
  %v72 = vlaneseq
  %v73 = vshrl.u32 %v72, 7
  %v74 = vsub.s32 0, %v73
  %v75 = vrot.slane %v70, %v74
  %v76 = vlaneseq
  %v77 = vshrl.u32 %v76, 7
  %v78 = vsub.s32 1, %v77
  %v79 = vrot.slane %v70, %v78
  %v82 = vmul.f32 %v75, %v28
  %v83 = vmul.f32 %v79, %v34
  %v84 = vmul.f32 %v75, %v29
  %v85 = vmul.f32 %v79, %v35
  %v86 = vadd.f32 %v65, %v82
  %v87 = vadd.f32 %v66, %v83
  %v88 = vadd.f32 %v67, %v84
  %v89 = vadd.f32 %v68, %v85
  %s90 = scalar_lea.vmem %s1, 2
  %v91 = vld [vmem:[%s90] ss:$8 sm:$0x3]
  %v93 = vlaneseq
  %v94 = vshrl.u32 %v93, 7
  %v95 = vsub.s32 0, %v94
  %v96 = vrot.slane %v91, %v95
  %v97 = vlaneseq
  %v98 = vshrl.u32 %v97, 7
  %v99 = vsub.s32 1, %v98
  %v100 = vrot.slane %v91, %v99
  %v103 = vmul.f32 %v96, %v45
  %v104 = vmul.f32 %v100, %v51
  %v105 = vmul.f32 %v96, %v46
  %v106 = vmul.f32 %v100, %v52
  %v107 = vadd.f32 %v86, %v103
  %v108 = vadd.f32 %v87, %v104
  %v109 = vadd.f32 %v88, %v105
  %v110 = vadd.f32 %v89, %v106
  %s111 = scalar_lea.vmem %s1, 3
  %v112 = vld [vmem:[%s111] ss:$8 sm:$0x3]
  %v114 = vlaneseq
  %v115 = vshrl.u32 %v114, 7
  %v116 = vsub.s32 0, %v115
  %v117 = vrot.slane %v112, %v116
  %v118 = vlaneseq
  %v119 = vshrl.u32 %v118, 7
  %v120 = vsub.s32 1, %v119
  %v121 = vrot.slane %v112, %v120
  %v124 = vmul.f32 %v117, %v11
  %v125 = vmul.f32 %v121, %v12
  %v126 = vmul.f32 %v117, %v13
  %v127 = vmul.f32 %v121, %v14
  %vm132 = vcmask 1046528
  %v133 = vrot.slane %v124, 1
  %v134 = vrot.slane %v126, 1
  %v135 = vsel %vm132, %v133, %v134
  %v136 = vrot.slane %v125, 1
  %v137 = vrot.slane %v127, 1
  %v138 = vsel %vm132, %v136, %v137
  %v143 = vadd.f32 %v107, %v135
  %v144 = vadd.f32 %v108, %v138
  %v145 = vadd.f32 %v109, %v134
  %v146 = vadd.f32 %v110, %v137
  %s147 = scalar_lea.vmem %s1, 4
  %v148 = vld [vmem:[%s147] ss:$8 sm:$0x3]
  %v150 = vlaneseq
  %v151 = vshrl.u32 %v150, 7
  %v152 = vsub.s32 0, %v151
  %v153 = vrot.slane %v148, %v152
  %v154 = vlaneseq
  %v155 = vshrl.u32 %v154, 7
  %v156 = vsub.s32 1, %v155
  %v157 = vrot.slane %v148, %v156
  %v160 = vmul.f32 %v153, %v28
  %v161 = vmul.f32 %v157, %v34
  %v162 = vmul.f32 %v153, %v29
  %v163 = vmul.f32 %v157, %v35
  %v168 = vrot.slane %v160, 1
  %v169 = vrot.slane %v162, 1
  %v170 = vsel %vm132, %v168, %v169
  %v171 = vrot.slane %v161, 1
  %v172 = vrot.slane %v163, 1
  %v173 = vsel %vm132, %v171, %v172
  %v178 = vadd.f32 %v143, %v170
  %v179 = vadd.f32 %v144, %v173
  %v180 = vadd.f32 %v145, %v169
  %v181 = vadd.f32 %v146, %v172
  %s182 = scalar_lea.vmem %s1, 5
  %v183 = vld [vmem:[%s182] ss:$8 sm:$0x3]
  %v185 = vlaneseq
  %v186 = vshrl.u32 %v185, 7
  %v187 = vsub.s32 0, %v186
  %v188 = vrot.slane %v183, %v187
  %v189 = vlaneseq
  %v190 = vshrl.u32 %v189, 7
  %v191 = vsub.s32 1, %v190
  %v192 = vrot.slane %v183, %v191
  %v195 = vmul.f32 %v188, %v45
  %v196 = vmul.f32 %v192, %v51
  %v197 = vmul.f32 %v188, %v46
  %v198 = vmul.f32 %v192, %v52
  %v203 = vrot.slane %v195, 1
  %v204 = vrot.slane %v197, 1
  %v205 = vsel %vm132, %v203, %v204
  %v206 = vrot.slane %v196, 1
  %v207 = vrot.slane %v198, 1
  %v208 = vsel %vm132, %v206, %v207
  %v213 = vadd.f32 %v178, %v205
  %v214 = vadd.f32 %v179, %v208
  %v215 = vadd.f32 %v180, %v204
  %v216 = vadd.f32 %v181, %v207
  %s217 = scalar_lea.vmem %s1, 6
  %v218 = vld [vmem:[%s217] ss:$8 sm:$0x3]
  %v220 = vlaneseq
  %v221 = vshrl.u32 %v220, 7
  %v222 = vsub.s32 0, %v221
  %v223 = vrot.slane %v218, %v222
  %v224 = vlaneseq
  %v225 = vshrl.u32 %v224, 7
  %v226 = vsub.s32 1, %v225
  %v227 = vrot.slane %v218, %v226
  %v230 = vmul.f32 %v223, %v11
  %v231 = vmul.f32 %v227, %v12
  %v232 = vmul.f32 %v223, %v13
  %v233 = vmul.f32 %v227, %v14
  %vm238 = vcmask 1045504
  %v239 = vrot.slane %v230, 2
  %v240 = vrot.slane %v232, 2
  %v241 = vsel %vm238, %v239, %v240
  %v242 = vrot.slane %v231, 2
  %v243 = vrot.slane %v233, 2
  %v244 = vsel %vm238, %v242, %v243
  %v249 = vadd.f32 %v213, %v241
  %v250 = vadd.f32 %v214, %v244
  %v251 = vadd.f32 %v215, %v240
  %v252 = vadd.f32 %v216, %v243
  %s253 = scalar_lea.vmem %s1, 7
  %v254 = vld [vmem:[%s253] ss:$8 sm:$0x3]
  %v256 = vlaneseq
  %v257 = vshrl.u32 %v256, 7
  %v258 = vsub.s32 0, %v257
  %v259 = vrot.slane %v254, %v258
  %v260 = vlaneseq
  %v261 = vshrl.u32 %v260, 7
  %v262 = vsub.s32 1, %v261
  %v263 = vrot.slane %v254, %v262
  %v266 = vmul.f32 %v259, %v28
  %v267 = vmul.f32 %v263, %v34
  %v268 = vmul.f32 %v259, %v29
  %v269 = vmul.f32 %v263, %v35
  %v274 = vrot.slane %v266, 2
  %v275 = vrot.slane %v268, 2
  %v276 = vsel %vm238, %v274, %v275
  %v277 = vrot.slane %v267, 2
  %v278 = vrot.slane %v269, 2
  %v279 = vsel %vm238, %v277, %v278
  %v284 = vadd.f32 %v249, %v276
  %v285 = vadd.f32 %v250, %v279
  %v286 = vadd.f32 %v251, %v275
  %v287 = vadd.f32 %v252, %v278
  %s288 = scalar_lea.vmem %s1, 16
  %v289 = vld [vmem:[%s288] ss:$8 sm:$0x3]
  %v291 = vlaneseq
  %v292 = vshrl.u32 %v291, 7
  %v293 = vsub.s32 0, %v292
  %v294 = vrot.slane %v289, %v293
  %v295 = vlaneseq
  %v296 = vshrl.u32 %v295, 7
  %v297 = vsub.s32 1, %v296
  %v298 = vrot.slane %v289, %v297
  %v301 = vmul.f32 %v294, %v45
  %v302 = vmul.f32 %v298, %v51
  %v303 = vmul.f32 %v294, %v46
  %v304 = vmul.f32 %v298, %v52
  %v309 = vrot.slane %v301, 2
  %v310 = vrot.slane %v303, 2
  %v311 = vsel %vm238, %v309, %v310
  %v312 = vrot.slane %v302, 2
  %v313 = vrot.slane %v304, 2
  %v314 = vsel %vm238, %v312, %v313
  %v319 = vadd.f32 %v284, %v311
  %v320 = vadd.f32 %v285, %v314
  %v321 = vadd.f32 %v286, %v310
  %v322 = vadd.f32 %v287, %v313
  %s323 = scalar_lea.vmem %s0, 32
  %v324 = vld [vmem:[%s323] sm:$0xff]
  %v325 = vld [vmem:[%s323 + $0x8] sm:$0xff]
  %v326 = vld [vmem:[%s323 + $0x10] sm:$0xff]
  %v327 = vld [vmem:[%s323 + $0x18] sm:$0xff]
  %332 = vrot.lane.b32.xlu0 %v324, 127
  %v333 = vpop.permute.xlu0 %332
  %334 = vrot.lane.b32.xlu0 %v325, 127
  %v335 = vpop.permute.xlu0 %334
  %336 = vrot.lane.b32.xlu0 %v326, 127
  %v337 = vpop.permute.xlu0 %336
  %338 = vrot.lane.b32.xlu0 %v327, 127
  %v339 = vpop.permute.xlu0 %338
  %v340 = vsel %vm27, %v333, %v335
  %v341 = vsel %vm27, %v337, %v339
  %v346 = vsel %vm27, %v335, 0.0
  %v347 = vsel %vm27, %v339, 0.0
  %348 = vrot.lane.b32.xlu0 %v324, 126
  %v349 = vpop.permute.xlu0 %348
  %350 = vrot.lane.b32.xlu0 %v325, 126
  %v351 = vpop.permute.xlu0 %350
  %352 = vrot.lane.b32.xlu0 %v326, 126
  %v353 = vpop.permute.xlu0 %352
  %354 = vrot.lane.b32.xlu0 %v327, 126
  %v355 = vpop.permute.xlu0 %354
  %v356 = vsel %vm44, %v349, %v351
  %v357 = vsel %vm44, %v353, %v355
  %v362 = vsel %vm44, %v351, 0.0
  %v363 = vsel %vm44, %v355, 0.0
  %s364 = scalar_lea.vmem %s1, 17
  %v365 = vld [vmem:[%s364] ss:$8 sm:$0x3]
  %v367 = vlaneseq
  %v368 = vshrl.u32 %v367, 7
  %v369 = vsub.s32 0, %v368
  %v370 = vrot.slane %v365, %v369
  %v371 = vlaneseq
  %v372 = vshrl.u32 %v371, 7
  %v373 = vsub.s32 1, %v372
  %v374 = vrot.slane %v365, %v373
  %v377 = vmul.f32 %v370, %v324
  %v378 = vmul.f32 %v374, %v325
  %v379 = vmul.f32 %v370, %v326
  %v380 = vmul.f32 %v374, %v327
  %s381 = scalar_lea.vmem %s1, 18
  %v382 = vld [vmem:[%s381] ss:$8 sm:$0x3]
  %v384 = vlaneseq
  %v385 = vshrl.u32 %v384, 7
  %v386 = vsub.s32 0, %v385
  %v387 = vrot.slane %v382, %v386
  %v388 = vlaneseq
  %v389 = vshrl.u32 %v388, 7
  %v390 = vsub.s32 1, %v389
  %v391 = vrot.slane %v382, %v390
  %v394 = vmul.f32 %v387, %v340
  %v395 = vmul.f32 %v391, %v346
  %v396 = vmul.f32 %v387, %v341
  %v397 = vmul.f32 %v391, %v347
  %v398 = vadd.f32 %v377, %v394
  %v399 = vadd.f32 %v378, %v395
  %v400 = vadd.f32 %v379, %v396
  %v401 = vadd.f32 %v380, %v397
  %s402 = scalar_lea.vmem %s1, 19
  %v403 = vld [vmem:[%s402] ss:$8 sm:$0x3]
  %v405 = vlaneseq
  %v406 = vshrl.u32 %v405, 7
  %v407 = vsub.s32 0, %v406
  %v408 = vrot.slane %v403, %v407
  %v409 = vlaneseq
  %v410 = vshrl.u32 %v409, 7
  %v411 = vsub.s32 1, %v410
  %v412 = vrot.slane %v403, %v411
  %v415 = vmul.f32 %v408, %v356
  %v416 = vmul.f32 %v412, %v362
  %v417 = vmul.f32 %v408, %v357
  %v418 = vmul.f32 %v412, %v363
  %v419 = vadd.f32 %v398, %v415
  %v420 = vadd.f32 %v399, %v416
  %v421 = vadd.f32 %v400, %v417
  %v422 = vadd.f32 %v401, %v418
  %s423 = scalar_lea.vmem %s1, 20
  %v424 = vld [vmem:[%s423] ss:$8 sm:$0x3]
  %v426 = vlaneseq
  %v427 = vshrl.u32 %v426, 7
  %v428 = vsub.s32 0, %v427
  %v429 = vrot.slane %v424, %v428
  %v430 = vlaneseq
  %v431 = vshrl.u32 %v430, 7
  %v432 = vsub.s32 1, %v431
  %v433 = vrot.slane %v424, %v432
  %v436 = vmul.f32 %v429, %v324
  %v437 = vmul.f32 %v433, %v325
  %v438 = vmul.f32 %v429, %v326
  %v439 = vmul.f32 %v433, %v327
  %v444 = vrot.slane %v436, 1
  %v445 = vrot.slane %v438, 1
  %v446 = vsel %vm132, %v444, %v445
  %v447 = vrot.slane %v437, 1
  %v448 = vrot.slane %v439, 1
  %v449 = vsel %vm132, %v447, %v448
  %v454 = vadd.f32 %v419, %v446
  %v455 = vadd.f32 %v420, %v449
  %v456 = vadd.f32 %v421, %v445
  %v457 = vadd.f32 %v422, %v448
  %s458 = scalar_lea.vmem %s1, 21
  %v459 = vld [vmem:[%s458] ss:$8 sm:$0x3]
  %v461 = vlaneseq
  %v462 = vshrl.u32 %v461, 7
  %v463 = vsub.s32 0, %v462
  %v464 = vrot.slane %v459, %v463
  %v465 = vlaneseq
  %v466 = vshrl.u32 %v465, 7
  %v467 = vsub.s32 1, %v466
  %v468 = vrot.slane %v459, %v467
  %v471 = vmul.f32 %v464, %v340
  %v472 = vmul.f32 %v468, %v346
  %v473 = vmul.f32 %v464, %v341
  %v474 = vmul.f32 %v468, %v347
  %v479 = vrot.slane %v471, 1
  %v480 = vrot.slane %v473, 1
  %v481 = vsel %vm132, %v479, %v480
  %v482 = vrot.slane %v472, 1
  %v483 = vrot.slane %v474, 1
  %v484 = vsel %vm132, %v482, %v483
  %v489 = vadd.f32 %v454, %v481
  %v490 = vadd.f32 %v455, %v484
  %v491 = vadd.f32 %v456, %v480
  %v492 = vadd.f32 %v457, %v483
  %s493 = scalar_lea.vmem %s1, 22
  %v494 = vld [vmem:[%s493] ss:$8 sm:$0x3]
  %v496 = vlaneseq
  %v497 = vshrl.u32 %v496, 7
  %v498 = vsub.s32 0, %v497
  %v499 = vrot.slane %v494, %v498
  %v500 = vlaneseq
  %v501 = vshrl.u32 %v500, 7
  %v502 = vsub.s32 1, %v501
  %v503 = vrot.slane %v494, %v502
  %v506 = vmul.f32 %v499, %v356
  %v507 = vmul.f32 %v503, %v362
  %v508 = vmul.f32 %v499, %v357
  %v509 = vmul.f32 %v503, %v363
  %v514 = vrot.slane %v506, 1
  %v515 = vrot.slane %v508, 1
  %v516 = vsel %vm132, %v514, %v515
  %v517 = vrot.slane %v507, 1
  %v518 = vrot.slane %v509, 1
  %v519 = vsel %vm132, %v517, %v518
  %v524 = vadd.f32 %v489, %v516
  %v525 = vadd.f32 %v490, %v519
  %v526 = vadd.f32 %v491, %v515
  %v527 = vadd.f32 %v492, %v518
  %s528 = scalar_lea.vmem %s1, 23
  %v529 = vld [vmem:[%s528] ss:$8 sm:$0x3]
  %v531 = vlaneseq
  %v532 = vshrl.u32 %v531, 7
  %v533 = vsub.s32 0, %v532
  %v534 = vrot.slane %v529, %v533
  %v535 = vlaneseq
  %v536 = vshrl.u32 %v535, 7
  %v537 = vsub.s32 1, %v536
  %v538 = vrot.slane %v529, %v537
  %v541 = vmul.f32 %v534, %v324
  %v542 = vmul.f32 %v538, %v325
  %v543 = vmul.f32 %v534, %v326
  %v544 = vmul.f32 %v538, %v327
  %v549 = vrot.slane %v541, 2
  %v550 = vrot.slane %v543, 2
  %v551 = vsel %vm238, %v549, %v550
  %v552 = vrot.slane %v542, 2
  %v553 = vrot.slane %v544, 2
  %v554 = vsel %vm238, %v552, %v553
  %v559 = vadd.f32 %v524, %v551
  %v560 = vadd.f32 %v525, %v554
  %v561 = vadd.f32 %v526, %v550
  %v562 = vadd.f32 %v527, %v553
  %s563 = scalar_lea.vmem %s1, 32
  %v564 = vld [vmem:[%s563] ss:$8 sm:$0x3]
  %v566 = vlaneseq
  %v567 = vshrl.u32 %v566, 7
  %v568 = vsub.s32 0, %v567
  %v569 = vrot.slane %v564, %v568
  %v570 = vlaneseq
  %v571 = vshrl.u32 %v570, 7
  %v572 = vsub.s32 1, %v571
  %v573 = vrot.slane %v564, %v572
  %v576 = vmul.f32 %v569, %v340
  %v577 = vmul.f32 %v573, %v346
  %v578 = vmul.f32 %v569, %v341
  %v579 = vmul.f32 %v573, %v347
  %v584 = vrot.slane %v576, 2
  %v585 = vrot.slane %v578, 2
  %v586 = vsel %vm238, %v584, %v585
  %v587 = vrot.slane %v577, 2
  %v588 = vrot.slane %v579, 2
  %v589 = vsel %vm238, %v587, %v588
  %v594 = vadd.f32 %v559, %v586
  %v595 = vadd.f32 %v560, %v589
  %v596 = vadd.f32 %v561, %v585
  %v597 = vadd.f32 %v562, %v588
  %s598 = scalar_lea.vmem %s1, 33
  %v599 = vld [vmem:[%s598] ss:$8 sm:$0x3]
  %v601 = vlaneseq
  %v602 = vshrl.u32 %v601, 7
  %v603 = vsub.s32 0, %v602
  %v604 = vrot.slane %v599, %v603
  %v605 = vlaneseq
  %v606 = vshrl.u32 %v605, 7
  %v607 = vsub.s32 1, %v606
  %v608 = vrot.slane %v599, %v607
  %v611 = vmul.f32 %v604, %v356
  %v612 = vmul.f32 %v608, %v362
  %v613 = vmul.f32 %v604, %v357
  %v614 = vmul.f32 %v608, %v363
  %v619 = vrot.slane %v611, 2
  %v620 = vrot.slane %v613, 2
  %v621 = vsel %vm238, %v619, %v620
  %v622 = vrot.slane %v612, 2
  %v623 = vrot.slane %v614, 2
  %v624 = vsel %vm238, %v622, %v623
  %v629 = vadd.f32 %v594, %v621
  %v630 = vadd.f32 %v595, %v624
  %v631 = vadd.f32 %v596, %v620
  %v632 = vadd.f32 %v597, %v623
  %s633 = scalar_lea.vmem %s0, 64
  %v634 = vld [vmem:[%s633] sm:$0xff]
  %v635 = vld [vmem:[%s633 + $0x8] sm:$0xff]
  %v636 = vld [vmem:[%s633 + $0x10] sm:$0xff]
  %v637 = vld [vmem:[%s633 + $0x18] sm:$0xff]
  %642 = vrot.lane.b32.xlu0 %v634, 127
  %v643 = vpop.permute.xlu0 %642
  %644 = vrot.lane.b32.xlu0 %v635, 127
  %v645 = vpop.permute.xlu0 %644
  %646 = vrot.lane.b32.xlu0 %v636, 127
  %v647 = vpop.permute.xlu0 %646
  %648 = vrot.lane.b32.xlu0 %v637, 127
  %v649 = vpop.permute.xlu0 %648
  %v650 = vsel %vm27, %v643, %v645
  %v651 = vsel %vm27, %v647, %v649
  %v656 = vsel %vm27, %v645, 0.0
  %v657 = vsel %vm27, %v649, 0.0
  %658 = vrot.lane.b32.xlu0 %v634, 126
  %v659 = vpop.permute.xlu0 %658
  %660 = vrot.lane.b32.xlu0 %v635, 126
  %v661 = vpop.permute.xlu0 %660
  %662 = vrot.lane.b32.xlu0 %v636, 126
  %v663 = vpop.permute.xlu0 %662
  %664 = vrot.lane.b32.xlu0 %v637, 126
  %v665 = vpop.permute.xlu0 %664
  %v666 = vsel %vm44, %v659, %v661
  %v667 = vsel %vm44, %v663, %v665
  %v672 = vsel %vm44, %v661, 0.0
  %v673 = vsel %vm44, %v665, 0.0
  %s674 = scalar_lea.vmem %s1, 34
  %v675 = vld [vmem:[%s674] ss:$8 sm:$0x3]
  %v677 = vlaneseq
  %v678 = vshrl.u32 %v677, 7
  %v679 = vsub.s32 0, %v678
  %v680 = vrot.slane %v675, %v679
  %v681 = vlaneseq
  %v682 = vshrl.u32 %v681, 7
  %v683 = vsub.s32 1, %v682
  %v684 = vrot.slane %v675, %v683
  %v687 = vmul.f32 %v680, %v634
  %v688 = vmul.f32 %v684, %v635
  %v689 = vmul.f32 %v680, %v636
  %v690 = vmul.f32 %v684, %v637
  %s691 = scalar_lea.vmem %s1, 35
  %v692 = vld [vmem:[%s691] ss:$8 sm:$0x3]
  %v694 = vlaneseq
  %v695 = vshrl.u32 %v694, 7
  %v696 = vsub.s32 0, %v695
  %v697 = vrot.slane %v692, %v696
  %v698 = vlaneseq
  %v699 = vshrl.u32 %v698, 7
  %v700 = vsub.s32 1, %v699
  %v701 = vrot.slane %v692, %v700
  %v704 = vmul.f32 %v697, %v650
  %v705 = vmul.f32 %v701, %v656
  %v706 = vmul.f32 %v697, %v651
  %v707 = vmul.f32 %v701, %v657
  %v708 = vadd.f32 %v687, %v704
  %v709 = vadd.f32 %v688, %v705
  %v710 = vadd.f32 %v689, %v706
  %v711 = vadd.f32 %v690, %v707
  %s712 = scalar_lea.vmem %s1, 36
  %v713 = vld [vmem:[%s712] ss:$8 sm:$0x3]
  %v715 = vlaneseq
  %v716 = vshrl.u32 %v715, 7
  %v717 = vsub.s32 0, %v716
  %v718 = vrot.slane %v713, %v717
  %v719 = vlaneseq
  %v720 = vshrl.u32 %v719, 7
  %v721 = vsub.s32 1, %v720
  %v722 = vrot.slane %v713, %v721
  %v725 = vmul.f32 %v718, %v666
  %v726 = vmul.f32 %v722, %v672
  %v727 = vmul.f32 %v718, %v667
  %v728 = vmul.f32 %v722, %v673
  %v729 = vadd.f32 %v708, %v725
  %v730 = vadd.f32 %v709, %v726
  %v731 = vadd.f32 %v710, %v727
  %v732 = vadd.f32 %v711, %v728
  %s733 = scalar_lea.vmem %s1, 37
  %v734 = vld [vmem:[%s733] ss:$8 sm:$0x3]
  %v736 = vlaneseq
  %v737 = vshrl.u32 %v736, 7
  %v738 = vsub.s32 0, %v737
  %v739 = vrot.slane %v734, %v738
  %v740 = vlaneseq
  %v741 = vshrl.u32 %v740, 7
  %v742 = vsub.s32 1, %v741
  %v743 = vrot.slane %v734, %v742
  %v746 = vmul.f32 %v739, %v634
  %v747 = vmul.f32 %v743, %v635
  %v748 = vmul.f32 %v739, %v636
  %v749 = vmul.f32 %v743, %v637
  %v754 = vrot.slane %v746, 1
  %v755 = vrot.slane %v748, 1
  %v756 = vsel %vm132, %v754, %v755
  %v757 = vrot.slane %v747, 1
  %v758 = vrot.slane %v749, 1
  %v759 = vsel %vm132, %v757, %v758
  %v764 = vadd.f32 %v729, %v756
  %v765 = vadd.f32 %v730, %v759
  %v766 = vadd.f32 %v731, %v755
  %v767 = vadd.f32 %v732, %v758
  %s768 = scalar_lea.vmem %s1, 38
  %v769 = vld [vmem:[%s768] ss:$8 sm:$0x3]
  %v771 = vlaneseq
  %v772 = vshrl.u32 %v771, 7
  %v773 = vsub.s32 0, %v772
  %v774 = vrot.slane %v769, %v773
  %v775 = vlaneseq
  %v776 = vshrl.u32 %v775, 7
  %v777 = vsub.s32 1, %v776
  %v778 = vrot.slane %v769, %v777
  %v781 = vmul.f32 %v774, %v650
  %v782 = vmul.f32 %v778, %v656
  %v783 = vmul.f32 %v774, %v651
  %v784 = vmul.f32 %v778, %v657
  %v789 = vrot.slane %v781, 1
  %v790 = vrot.slane %v783, 1
  %v791 = vsel %vm132, %v789, %v790
  %v792 = vrot.slane %v782, 1
  %v793 = vrot.slane %v784, 1
  %v794 = vsel %vm132, %v792, %v793
  %v799 = vadd.f32 %v764, %v791
  %v800 = vadd.f32 %v765, %v794
  %v801 = vadd.f32 %v766, %v790
  %v802 = vadd.f32 %v767, %v793
  %s803 = scalar_lea.vmem %s1, 39
  %v804 = vld [vmem:[%s803] ss:$8 sm:$0x3]
  %v806 = vlaneseq
  %v807 = vshrl.u32 %v806, 7
  %v808 = vsub.s32 0, %v807
  %v809 = vrot.slane %v804, %v808
  %v810 = vlaneseq
  %v811 = vshrl.u32 %v810, 7
  %v812 = vsub.s32 1, %v811
  %v813 = vrot.slane %v804, %v812
  %v816 = vmul.f32 %v809, %v666
  %v817 = vmul.f32 %v813, %v672
  %v818 = vmul.f32 %v809, %v667
  %v819 = vmul.f32 %v813, %v673
  %v824 = vrot.slane %v816, 1
  %v825 = vrot.slane %v818, 1
  %v826 = vsel %vm132, %v824, %v825
  %v827 = vrot.slane %v817, 1
  %v828 = vrot.slane %v819, 1
  %v829 = vsel %vm132, %v827, %v828
  %v834 = vadd.f32 %v799, %v826
  %v835 = vadd.f32 %v800, %v829
  %v836 = vadd.f32 %v801, %v825
  %v837 = vadd.f32 %v802, %v828
  %s838 = scalar_lea.vmem %s1, 48
  %v839 = vld [vmem:[%s838] ss:$8 sm:$0x3]
  %v841 = vlaneseq
  %v842 = vshrl.u32 %v841, 7
  %v843 = vsub.s32 0, %v842
  %v844 = vrot.slane %v839, %v843
  %v845 = vlaneseq
  %v846 = vshrl.u32 %v845, 7
  %v847 = vsub.s32 1, %v846
  %v848 = vrot.slane %v839, %v847
  %v851 = vmul.f32 %v844, %v634
  %v852 = vmul.f32 %v848, %v635
  %v853 = vmul.f32 %v844, %v636
  %v854 = vmul.f32 %v848, %v637
  %v859 = vrot.slane %v851, 2
  %v860 = vrot.slane %v853, 2
  %v861 = vsel %vm238, %v859, %v860
  %v862 = vrot.slane %v852, 2
  %v863 = vrot.slane %v854, 2
  %v864 = vsel %vm238, %v862, %v863
  %v869 = vadd.f32 %v834, %v861
  %v870 = vadd.f32 %v835, %v864
  %v871 = vadd.f32 %v836, %v860
  %v872 = vadd.f32 %v837, %v863
  %s873 = scalar_lea.vmem %s1, 49
  %v874 = vld [vmem:[%s873] ss:$8 sm:$0x3]
  %v876 = vlaneseq
  %v877 = vshrl.u32 %v876, 7
  %v878 = vsub.s32 0, %v877
  %v879 = vrot.slane %v874, %v878
  %v880 = vlaneseq
  %v881 = vshrl.u32 %v880, 7
  %v882 = vsub.s32 1, %v881
  %v883 = vrot.slane %v874, %v882
  %v886 = vmul.f32 %v879, %v650
  %v887 = vmul.f32 %v883, %v656
  %v888 = vmul.f32 %v879, %v651
  %v889 = vmul.f32 %v883, %v657
  %v894 = vrot.slane %v886, 2
  %v895 = vrot.slane %v888, 2
  %v896 = vsel %vm238, %v894, %v895
  %v897 = vrot.slane %v887, 2
  %v898 = vrot.slane %v889, 2
  %v899 = vsel %vm238, %v897, %v898
  %v904 = vadd.f32 %v869, %v896
  %v905 = vadd.f32 %v870, %v899
  %v906 = vadd.f32 %v871, %v895
  %v907 = vadd.f32 %v872, %v898
  %s908 = scalar_lea.vmem %s1, 50
  %v909 = vld [vmem:[%s908] ss:$8 sm:$0x3]
  %v911 = vlaneseq
  %v912 = vshrl.u32 %v911, 7
  %v913 = vsub.s32 0, %v912
  %v914 = vrot.slane %v909, %v913
  %v915 = vlaneseq
  %v916 = vshrl.u32 %v915, 7
  %v917 = vsub.s32 1, %v916
  %v918 = vrot.slane %v909, %v917
  %v921 = vmul.f32 %v914, %v666
  %v922 = vmul.f32 %v918, %v672
  %v923 = vmul.f32 %v914, %v667
  %v924 = vmul.f32 %v918, %v673
  %v929 = vrot.slane %v921, 2
  %v930 = vrot.slane %v923, 2
  %v931 = vsel %vm238, %v929, %v930
  %v932 = vrot.slane %v922, 2
  %v933 = vrot.slane %v924, 2
  %v934 = vsel %vm238, %v932, %v933
  %v939 = vadd.f32 %v904, %v931
  %v940 = vadd.f32 %v905, %v934
  %v941 = vadd.f32 %v906, %v930
  %v942 = vadd.f32 %v907, %v933
  %s943 = scalar_lea.vmem %s0, 96
  %v944 = vld [vmem:[%s943] sm:$0xff]
  %v945 = vld [vmem:[%s943 + $0x8] sm:$0xff]
  %v946 = vld [vmem:[%s943 + $0x10] sm:$0xff]
  %v947 = vld [vmem:[%s943 + $0x18] sm:$0xff]
  %952 = vrot.lane.b32.xlu0 %v944, 127
  %v953 = vpop.permute.xlu0 %952
  %954 = vrot.lane.b32.xlu0 %v945, 127
  %v955 = vpop.permute.xlu0 %954
  %956 = vrot.lane.b32.xlu0 %v946, 127
  %v957 = vpop.permute.xlu0 %956
  %958 = vrot.lane.b32.xlu0 %v947, 127
  %v959 = vpop.permute.xlu0 %958
  %v960 = vsel %vm27, %v953, %v955
  %v961 = vsel %vm27, %v957, %v959
  %v966 = vsel %vm27, %v955, 0.0
  %v967 = vsel %vm27, %v959, 0.0
  %968 = vrot.lane.b32.xlu0 %v944, 126
  %v969 = vpop.permute.xlu0 %968
  %970 = vrot.lane.b32.xlu0 %v945, 126
  %v971 = vpop.permute.xlu0 %970
  %972 = vrot.lane.b32.xlu0 %v946, 126
  %v973 = vpop.permute.xlu0 %972
  %974 = vrot.lane.b32.xlu0 %v947, 126
  %v975 = vpop.permute.xlu0 %974
  %v976 = vsel %vm44, %v969, %v971
  %v977 = vsel %vm44, %v973, %v975
  %v982 = vsel %vm44, %v971, 0.0
  %v983 = vsel %vm44, %v975, 0.0
  %s984 = scalar_lea.vmem %s1, 51
  %v985 = vld [vmem:[%s984] ss:$8 sm:$0x3]
  %v987 = vlaneseq
  %v988 = vshrl.u32 %v987, 7
  %v989 = vsub.s32 0, %v988
  %v990 = vrot.slane %v985, %v989
  %v991 = vlaneseq
  %v992 = vshrl.u32 %v991, 7
  %v993 = vsub.s32 1, %v992
  %v994 = vrot.slane %v985, %v993
  %v997 = vmul.f32 %v990, %v944
  %v998 = vmul.f32 %v994, %v945
  %v999 = vmul.f32 %v990, %v946
  %v1000 = vmul.f32 %v994, %v947
  %s1001 = scalar_lea.vmem %s1, 52
  %v1002 = vld [vmem:[%s1001] ss:$8 sm:$0x3]
  %v1004 = vlaneseq
  %v1005 = vshrl.u32 %v1004, 7
  %v1006 = vsub.s32 0, %v1005
  %v1007 = vrot.slane %v1002, %v1006
  %v1008 = vlaneseq
  %v1009 = vshrl.u32 %v1008, 7
  %v1010 = vsub.s32 1, %v1009
  %v1011 = vrot.slane %v1002, %v1010
  %v1014 = vmul.f32 %v1007, %v960
  %v1015 = vmul.f32 %v1011, %v966
  %v1016 = vmul.f32 %v1007, %v961
  %v1017 = vmul.f32 %v1011, %v967
  %v1018 = vadd.f32 %v997, %v1014
  %v1019 = vadd.f32 %v998, %v1015
  %v1020 = vadd.f32 %v999, %v1016
  %v1021 = vadd.f32 %v1000, %v1017
  %s1022 = scalar_lea.vmem %s1, 53
  %v1023 = vld [vmem:[%s1022] ss:$8 sm:$0x3]
  %v1025 = vlaneseq
  %v1026 = vshrl.u32 %v1025, 7
  %v1027 = vsub.s32 0, %v1026
  %v1028 = vrot.slane %v1023, %v1027
  %v1029 = vlaneseq
  %v1030 = vshrl.u32 %v1029, 7
  %v1031 = vsub.s32 1, %v1030
  %v1032 = vrot.slane %v1023, %v1031
  %v1035 = vmul.f32 %v1028, %v976
  %v1036 = vmul.f32 %v1032, %v982
  %v1037 = vmul.f32 %v1028, %v977
  %v1038 = vmul.f32 %v1032, %v983
  %v1039 = vadd.f32 %v1018, %v1035
  %v1040 = vadd.f32 %v1019, %v1036
  %v1041 = vadd.f32 %v1020, %v1037
  %v1042 = vadd.f32 %v1021, %v1038
  %s1043 = scalar_lea.vmem %s1, 54
  %v1044 = vld [vmem:[%s1043] ss:$8 sm:$0x3]
  %v1046 = vlaneseq
  %v1047 = vshrl.u32 %v1046, 7
  %v1048 = vsub.s32 0, %v1047
  %v1049 = vrot.slane %v1044, %v1048
  %v1050 = vlaneseq
  %v1051 = vshrl.u32 %v1050, 7
  %v1052 = vsub.s32 1, %v1051
  %v1053 = vrot.slane %v1044, %v1052
  %v1056 = vmul.f32 %v1049, %v944
  %v1057 = vmul.f32 %v1053, %v945
  %v1058 = vmul.f32 %v1049, %v946
  %v1059 = vmul.f32 %v1053, %v947
  %v1064 = vrot.slane %v1056, 1
  %v1065 = vrot.slane %v1058, 1
  %v1066 = vsel %vm132, %v1064, %v1065
  %v1067 = vrot.slane %v1057, 1
  %v1068 = vrot.slane %v1059, 1
  %v1069 = vsel %vm132, %v1067, %v1068
  %v1074 = vadd.f32 %v1039, %v1066
  %v1075 = vadd.f32 %v1040, %v1069
  %v1076 = vadd.f32 %v1041, %v1065
  %v1077 = vadd.f32 %v1042, %v1068
  %s1078 = scalar_lea.vmem %s1, 55
  %v1079 = vld [vmem:[%s1078] ss:$8 sm:$0x3]
  %v1081 = vlaneseq
  %v1082 = vshrl.u32 %v1081, 7
  %v1083 = vsub.s32 0, %v1082
  %v1084 = vrot.slane %v1079, %v1083
  %v1085 = vlaneseq
  %v1086 = vshrl.u32 %v1085, 7
  %v1087 = vsub.s32 1, %v1086
  %v1088 = vrot.slane %v1079, %v1087
  %v1091 = vmul.f32 %v1084, %v960
  %v1092 = vmul.f32 %v1088, %v966
  %v1093 = vmul.f32 %v1084, %v961
  %v1094 = vmul.f32 %v1088, %v967
  %v1099 = vrot.slane %v1091, 1
  %v1100 = vrot.slane %v1093, 1
  %v1101 = vsel %vm132, %v1099, %v1100
  %v1102 = vrot.slane %v1092, 1
  %v1103 = vrot.slane %v1094, 1
  %v1104 = vsel %vm132, %v1102, %v1103
  %v1109 = vadd.f32 %v1074, %v1101
  %v1110 = vadd.f32 %v1075, %v1104
  %v1111 = vadd.f32 %v1076, %v1100
  %v1112 = vadd.f32 %v1077, %v1103
  %s1113 = scalar_lea.vmem %s1, 64
  %v1114 = vld [vmem:[%s1113] ss:$8 sm:$0x3]
  %v1116 = vlaneseq
  %v1117 = vshrl.u32 %v1116, 7
  %v1118 = vsub.s32 0, %v1117
  %v1119 = vrot.slane %v1114, %v1118
  %v1120 = vlaneseq
  %v1121 = vshrl.u32 %v1120, 7
  %v1122 = vsub.s32 1, %v1121
  %v1123 = vrot.slane %v1114, %v1122
  %v1126 = vmul.f32 %v1119, %v976
  %v1127 = vmul.f32 %v1123, %v982
  %v1128 = vmul.f32 %v1119, %v977
  %v1129 = vmul.f32 %v1123, %v983
  %v1134 = vrot.slane %v1126, 1
  %v1135 = vrot.slane %v1128, 1
  %v1136 = vsel %vm132, %v1134, %v1135
  %v1137 = vrot.slane %v1127, 1
  %v1138 = vrot.slane %v1129, 1
  %v1139 = vsel %vm132, %v1137, %v1138
  %v1144 = vadd.f32 %v1109, %v1136
  %v1145 = vadd.f32 %v1110, %v1139
  %v1146 = vadd.f32 %v1111, %v1135
  %v1147 = vadd.f32 %v1112, %v1138
  %s1148 = scalar_lea.vmem %s1, 65
  %v1149 = vld [vmem:[%s1148] ss:$8 sm:$0x3]
  %v1151 = vlaneseq
  %v1152 = vshrl.u32 %v1151, 7
  %v1153 = vsub.s32 0, %v1152
  %v1154 = vrot.slane %v1149, %v1153
  %v1155 = vlaneseq
  %v1156 = vshrl.u32 %v1155, 7
  %v1157 = vsub.s32 1, %v1156
  %v1158 = vrot.slane %v1149, %v1157
  %v1161 = vmul.f32 %v1154, %v944
  %v1162 = vmul.f32 %v1158, %v945
  %v1163 = vmul.f32 %v1154, %v946
  %v1164 = vmul.f32 %v1158, %v947
  %v1169 = vrot.slane %v1161, 2
  %v1170 = vrot.slane %v1163, 2
  %v1171 = vsel %vm238, %v1169, %v1170
  %v1172 = vrot.slane %v1162, 2
  %v1173 = vrot.slane %v1164, 2
  %v1174 = vsel %vm238, %v1172, %v1173
  %v1179 = vadd.f32 %v1144, %v1171
  %v1180 = vadd.f32 %v1145, %v1174
  %v1181 = vadd.f32 %v1146, %v1170
  %v1182 = vadd.f32 %v1147, %v1173
  %s1183 = scalar_lea.vmem %s1, 66
  %v1184 = vld [vmem:[%s1183] ss:$8 sm:$0x3]
  %v1186 = vlaneseq
  %v1187 = vshrl.u32 %v1186, 7
  %v1188 = vsub.s32 0, %v1187
  %v1189 = vrot.slane %v1184, %v1188
  %v1190 = vlaneseq
  %v1191 = vshrl.u32 %v1190, 7
  %v1192 = vsub.s32 1, %v1191
  %v1193 = vrot.slane %v1184, %v1192
  %v1196 = vmul.f32 %v1189, %v960
  %v1197 = vmul.f32 %v1193, %v966
  %v1198 = vmul.f32 %v1189, %v961
  %v1199 = vmul.f32 %v1193, %v967
  %v1204 = vrot.slane %v1196, 2
  %v1205 = vrot.slane %v1198, 2
  %v1206 = vsel %vm238, %v1204, %v1205
  %v1207 = vrot.slane %v1197, 2
  %v1208 = vrot.slane %v1199, 2
  %v1209 = vsel %vm238, %v1207, %v1208
  %v1214 = vadd.f32 %v1179, %v1206
  %v1215 = vadd.f32 %v1180, %v1209
  %v1216 = vadd.f32 %v1181, %v1205
  %v1217 = vadd.f32 %v1182, %v1208
  %s1218 = scalar_lea.vmem %s1, 67
  %v1219 = vld [vmem:[%s1218] ss:$8 sm:$0x3]
  %v1221 = vlaneseq
  %v1222 = vshrl.u32 %v1221, 7
  %v1223 = vsub.s32 0, %v1222
  %v1224 = vrot.slane %v1219, %v1223
  %v1225 = vlaneseq
  %v1226 = vshrl.u32 %v1225, 7
  %v1227 = vsub.s32 1, %v1226
  %v1228 = vrot.slane %v1219, %v1227
  %v1231 = vmul.f32 %v1224, %v976
  %v1232 = vmul.f32 %v1228, %v982
  %v1233 = vmul.f32 %v1224, %v977
  %v1234 = vmul.f32 %v1228, %v983
  %v1239 = vrot.slane %v1231, 2
  %v1240 = vrot.slane %v1233, 2
  %v1241 = vsel %vm238, %v1239, %v1240
  %v1242 = vrot.slane %v1232, 2
  %v1243 = vrot.slane %v1234, 2
  %v1244 = vsel %vm238, %v1242, %v1243
  %v1249 = vadd.f32 %v1214, %v1241
  %v1250 = vadd.f32 %v1215, %v1244
  %v1251 = vadd.f32 %v1216, %v1240
  %v1252 = vadd.f32 %v1217, %v1243
  %v1253 = vadd.f32 %v319, %v629
  %v1254 = vadd.f32 %v320, %v630
  %v1255 = vadd.f32 %v321, %v631
  %v1256 = vadd.f32 %v322, %v632
  %v1257 = vadd.f32 %v1253, %v939
  %v1258 = vadd.f32 %v1254, %v940
  %v1259 = vadd.f32 %v1255, %v941
  %v1260 = vadd.f32 %v1256, %v942
  %v1261 = vadd.f32 %v1257, %v1249
  %v1262 = vadd.f32 %v1258, %v1250
  %v1263 = vadd.f32 %v1259, %v1251
  %v1264 = vadd.f32 %v1260, %v1252
  %s1265 = scalar_lea.vmem %s1, 68
  %v1266 = vld [vmem:[%s1265] ss:$8 sm:$0x3]
  %v1268 = vlaneseq
  %v1269 = vshrl.u32 %v1268, 7
  %v1270 = vsub.s32 0, %v1269
  %v1271 = vrot.slane %v1266, %v1270
  %v1272 = vlaneseq
  %v1273 = vshrl.u32 %v1272, 7
  %v1274 = vsub.s32 1, %v1273
  %v1275 = vrot.slane %v1266, %v1274
  %v1278 = vadd.f32 %v1261, %v1271
  %v1279 = vadd.f32 %v1262, %v1275
  %v1280 = vadd.f32 %v1263, %v1271
  %v1281 = vadd.f32 %v1264, %v1275
  %s1282 = scalar_lea.vmem %s1, 69
  %v1283 = vld [vmem:[%s1282] ss:$8 sm:$0x3]
  %v1285 = vlaneseq
  %v1286 = vshrl.u32 %v1285, 7
  %v1287 = vsub.s32 0, %v1286
  %v1288 = vrot.slane %v1283, %v1287
  %v1289 = vlaneseq
  %v1290 = vshrl.u32 %v1289, 7
  %v1291 = vsub.s32 1, %v1290
  %v1292 = vrot.slane %v1283, %v1291
  %v1295 = vmul.f32 %v1278, %v1288
  %v1296 = vmul.f32 %v1279, %v1292
  %v1297 = vmul.f32 %v1280, %v1288
  %v1298 = vmul.f32 %v1281, %v1292
  %vm1303 = vcmask 1042432
  %v1304 = vrot.slane %v1295, 5
  %v1305 = vrot.slane %v1296, 5
  %v1306 = vrot.slane %v1297, 5
  %v1307 = vsel %vm1303, %v1304, %v1306
  %v1308 = vrot.slane %v1298, 5
  %v1309 = vsel %vm1303, %v1305, %v1308
  %v1316 = vsel %vm1303, 0.0, %v1304
  %v1317 = vsel %vm1303, 0.0, %v1305
  %vm1318 = vcmask 1040384
  %v1319 = vsel %vm1318, %v1306, 0.0
  %v1320 = vsel %vm1318, %v1308, 0.0
  %1325 = vrot.lane.b32.xlu0 %v1316, 127
  %v1326 = vpop.permute.xlu0 %1325
  %1327 = vrot.lane.b32.xlu0 %v1317, 127
  %v1328 = vpop.permute.xlu0 %1327
  %1329 = vrot.lane.b32.xlu0 %v1307, 127
  %v1330 = vpop.permute.xlu0 %1329
  %1331 = vrot.lane.b32.xlu0 %v1309, 127
  %v1332 = vpop.permute.xlu0 %1331
  %1333 = vrot.lane.b32.xlu0 %v1319, 127
  %v1334 = vpop.permute.xlu0 %1333
  %1335 = vrot.lane.b32.xlu0 %v1320, 127
  %v1336 = vpop.permute.xlu0 %1335
  %v1337 = vsel %vm27, %v1326, %v1328
  %v1338 = vsel %vm27, %v1330, %v1332
  %v1339 = vsel %vm27, %v1334, %v1336
  %v1346 = vsel %vm27, %v1328, 0.0
  %v1347 = vsel %vm27, %v1332, 0.0
  %v1348 = vsel %vm27, %v1336, 0.0
  %1349 = vrot.lane.b32.xlu0 %v1316, 126
  %v1350 = vpop.permute.xlu0 %1349
  %1351 = vrot.lane.b32.xlu0 %v1317, 126
  %v1352 = vpop.permute.xlu0 %1351
  %1353 = vrot.lane.b32.xlu0 %v1307, 126
  %v1354 = vpop.permute.xlu0 %1353
  %1355 = vrot.lane.b32.xlu0 %v1309, 126
  %v1356 = vpop.permute.xlu0 %1355
  %1357 = vrot.lane.b32.xlu0 %v1319, 126
  %v1358 = vpop.permute.xlu0 %1357
  %1359 = vrot.lane.b32.xlu0 %v1320, 126
  %v1360 = vpop.permute.xlu0 %1359
  %v1361 = vsel %vm44, %v1350, %v1352
  %v1362 = vsel %vm44, %v1354, %v1356
  %v1363 = vsel %vm44, %v1358, %v1360
  %v1370 = vsel %vm44, %v1352, 0.0
  %v1371 = vsel %vm44, %v1356, 0.0
  %v1372 = vsel %vm44, %v1360, 0.0
  %v1373 = vmul.f32 %v1316, 0.25
  %v1374 = vmul.f32 %v1317, 0.25
  %v1375 = vmul.f32 %v1307, 0.25
  %v1376 = vmul.f32 %v1309, 0.25
  %v1377 = vmul.f32 %v1319, 0.25
  %v1378 = vmul.f32 %v1320, 0.25
  %v1379 = vmul.f32 %v1337, 0.75
  %v1380 = vmul.f32 %v1346, 0.75
  %v1381 = vmul.f32 %v1338, 0.75
  %v1382 = vmul.f32 %v1347, 0.75
  %v1383 = vmul.f32 %v1339, 0.75
  %v1384 = vmul.f32 %v1348, 0.75
  %v1385 = vadd.f32 %v1373, %v1379
  %v1386 = vadd.f32 %v1374, %v1380
  %v1387 = vadd.f32 %v1375, %v1381
  %v1388 = vadd.f32 %v1376, %v1382
  %v1389 = vadd.f32 %v1377, %v1383
  %v1390 = vadd.f32 %v1378, %v1384
  %v1391 = vmul.f32 %v1361, 0.25
  %v1392 = vmul.f32 %v1370, 0.25
  %v1393 = vmul.f32 %v1362, 0.25
  %v1394 = vmul.f32 %v1371, 0.25
  %v1395 = vmul.f32 %v1363, 0.25
  %v1396 = vmul.f32 %v1372, 0.25
  %v1397 = vadd.f32 %v1379, %v1391
  %v1398 = vadd.f32 %v1380, %v1392
  %v1399 = vadd.f32 %v1381, %v1393
  %v1400 = vadd.f32 %v1382, %v1394
  %v1401 = vadd.f32 %v1383, %v1395
  %v1402 = vadd.f32 %v1384, %v1396
  %v1403 = vmul.f32 %v1385, 0.25
  %v1404 = vmul.f32 %v1386, 0.25
  %v1405 = vmul.f32 %v1387, 0.25
  %v1406 = vmul.f32 %v1388, 0.25
  %v1407 = vmul.f32 %v1389, 0.25
  %v1408 = vmul.f32 %v1390, 0.25
  %v1409 = vmul.f32 %v1385, 0.75
  %v1410 = vmul.f32 %v1386, 0.75
  %v1411 = vmul.f32 %v1387, 0.75
  %v1412 = vmul.f32 %v1388, 0.75
  %v1413 = vmul.f32 %v1389, 0.75
  %v1414 = vmul.f32 %v1390, 0.75
  %v1421 = vrot.slane %v1409, 1
  %v1422 = vrot.slane %v1411, 1
  %v1423 = vsel %vm132, %v1421, %v1422
  %v1424 = vrot.slane %v1410, 1
  %v1425 = vrot.slane %v1412, 1
  %v1426 = vsel %vm132, %v1424, %v1425
  %v1427 = vrot.slane %v1413, 1
  %v1428 = vsel %vm132, %v1422, %v1427
  %v1429 = vrot.slane %v1414, 1
  %v1430 = vsel %vm132, %v1425, %v1429
  %v1437 = vadd.f32 %v1403, %v1423
  %v1438 = vadd.f32 %v1404, %v1426
  %v1439 = vadd.f32 %v1405, %v1428
  %v1440 = vadd.f32 %v1406, %v1430
  %v1441 = vadd.f32 %v1407, %v1427
  %v1442 = vadd.f32 %v1408, %v1429
  %vm1443 = vcmp.ge.f32.partialorder %v1437, 0.0
  %vm1444 = vcmp.ge.f32.partialorder %v1438, 0.0
  %vm1445 = vcmp.ge.f32.partialorder %v1439, 0.0
  %vm1446 = vcmp.ge.f32.partialorder %v1440, 0.0
  %vm1447 = vcmp.ge.f32.partialorder %v1441, 0.0
  %vm1448 = vcmp.ge.f32.partialorder %v1442, 0.0
  %v1449 = vmul.f32 %v1437, 0.2
  %v1450 = vmul.f32 %v1438, 0.2
  %v1451 = vmul.f32 %v1439, 0.2
  %v1452 = vmul.f32 %v1440, 0.2
  %v1453 = vmul.f32 %v1441, 0.2
  %v1454 = vmul.f32 %v1442, 0.2
  %v1455 = vsel %vm1443, %v1437, %v1449
  %v1456 = vsel %vm1444, %v1438, %v1450
  %v1457 = vsel %vm1445, %v1439, %v1451
  %v1458 = vsel %vm1446, %v1440, %v1452
  %v1459 = vsel %vm1447, %v1441, %v1453
  %v1460 = vsel %vm1448, %v1442, %v1454
  %v1461 = vmul.f32 %v1397, 0.25
  %v1462 = vmul.f32 %v1398, 0.25
  %v1463 = vmul.f32 %v1399, 0.25
  %v1464 = vmul.f32 %v1400, 0.25
  %v1465 = vmul.f32 %v1401, 0.25
  %v1466 = vmul.f32 %v1402, 0.25
  %v1467 = vmul.f32 %v1397, 0.75
  %v1468 = vmul.f32 %v1398, 0.75
  %v1469 = vmul.f32 %v1399, 0.75
  %v1470 = vmul.f32 %v1400, 0.75
  %v1471 = vmul.f32 %v1401, 0.75
  %v1472 = vmul.f32 %v1402, 0.75
  %v1479 = vrot.slane %v1467, 1
  %v1480 = vrot.slane %v1469, 1
  %v1481 = vsel %vm132, %v1479, %v1480
  %v1482 = vrot.slane %v1468, 1
  %v1483 = vrot.slane %v1470, 1
  %v1484 = vsel %vm132, %v1482, %v1483
  %v1485 = vrot.slane %v1471, 1
  %v1486 = vsel %vm132, %v1480, %v1485
  %v1487 = vrot.slane %v1472, 1
  %v1488 = vsel %vm132, %v1483, %v1487
  %v1495 = vadd.f32 %v1461, %v1481
  %v1496 = vadd.f32 %v1462, %v1484
  %v1497 = vadd.f32 %v1463, %v1486
  %v1498 = vadd.f32 %v1464, %v1488
  %v1499 = vadd.f32 %v1465, %v1485
  %v1500 = vadd.f32 %v1466, %v1487
  %vm1501 = vcmp.ge.f32.partialorder %v1495, 0.0
  %vm1502 = vcmp.ge.f32.partialorder %v1496, 0.0
  %vm1503 = vcmp.ge.f32.partialorder %v1497, 0.0
  %vm1504 = vcmp.ge.f32.partialorder %v1498, 0.0
  %vm1505 = vcmp.ge.f32.partialorder %v1499, 0.0
  %vm1506 = vcmp.ge.f32.partialorder %v1500, 0.0
  %v1507 = vmul.f32 %v1495, 0.2
  %v1508 = vmul.f32 %v1496, 0.2
  %v1509 = vmul.f32 %v1497, 0.2
  %v1510 = vmul.f32 %v1498, 0.2
  %v1511 = vmul.f32 %v1499, 0.2
  %v1512 = vmul.f32 %v1500, 0.2
  %v1513 = vsel %vm1501, %v1495, %v1507
  %v1514 = vsel %vm1502, %v1496, %v1508
  %v1515 = vsel %vm1503, %v1497, %v1509
  %v1516 = vsel %vm1504, %v1498, %v1510
  %v1517 = vsel %vm1505, %v1499, %v1511
  %v1518 = vsel %vm1506, %v1500, %v1512
  %v1519 = vmul.f32 %v1513, 0.17677669
  %v1520 = vmul.f32 %v1514, 0.17677669
  %v1521 = vmul.f32 %v1515, 0.17677669
  %v1522 = vmul.f32 %v1516, 0.17677669
  %v1523 = vmul.f32 %v1517, 0.17677669
  %v1524 = vmul.f32 %v1518, 0.17677669
  %1531 = vrot.lane.b32.xlu0 %v1455, 127
  %v1532 = vpop.permute.xlu0 %1531
  %1533 = vrot.lane.b32.xlu0 %v1456, 127
  %v1534 = vpop.permute.xlu0 %1533
  %1535 = vrot.lane.b32.xlu0 %v1457, 127
  %v1536 = vpop.permute.xlu0 %1535
  %1537 = vrot.lane.b32.xlu0 %v1458, 127
  %v1538 = vpop.permute.xlu0 %1537
  %1539 = vrot.lane.b32.xlu0 %v1459, 127
  %v1540 = vpop.permute.xlu0 %1539
  %1541 = vrot.lane.b32.xlu0 %v1460, 127
  %v1542 = vpop.permute.xlu0 %1541
  %v1543 = vsel %vm27, %v1532, %v1534
  %v1544 = vsel %vm27, %v1536, %v1538
  %v1545 = vsel %vm27, %v1540, %v1542
  %v1552 = vsel %vm27, %v1534, 0.0
  %v1553 = vsel %vm27, %v1538, 0.0
  %v1554 = vsel %vm27, %v1542, 0.0
  %v1555 = vmul.f32 %v1543, 0.53033006
  %v1556 = vmul.f32 %v1552, 0.53033006
  %v1557 = vmul.f32 %v1544, 0.53033006
  %v1558 = vmul.f32 %v1553, 0.53033006
  %v1559 = vmul.f32 %v1545, 0.53033006
  %v1560 = vmul.f32 %v1554, 0.53033006
  %v1561 = vadd.f32 %v1519, %v1555
  %v1562 = vadd.f32 %v1520, %v1556
  %v1563 = vadd.f32 %v1521, %v1557
  %v1564 = vadd.f32 %v1522, %v1558
  %v1565 = vadd.f32 %v1523, %v1559
  %v1566 = vadd.f32 %v1524, %v1560
  %1573 = vrot.lane.b32.xlu0 %v1513, 127
  %v1574 = vpop.permute.xlu0 %1573
  %1575 = vrot.lane.b32.xlu0 %v1514, 127
  %v1576 = vpop.permute.xlu0 %1575
  %1577 = vrot.lane.b32.xlu0 %v1515, 127
  %v1578 = vpop.permute.xlu0 %1577
  %1579 = vrot.lane.b32.xlu0 %v1516, 127
  %v1580 = vpop.permute.xlu0 %1579
  %1581 = vrot.lane.b32.xlu0 %v1517, 127
  %v1582 = vpop.permute.xlu0 %1581
  %1583 = vrot.lane.b32.xlu0 %v1518, 127
  %v1584 = vpop.permute.xlu0 %1583
  %v1585 = vsel %vm27, %v1574, %v1576
  %v1586 = vsel %vm27, %v1578, %v1580
  %v1587 = vsel %vm27, %v1582, %v1584
  %v1594 = vsel %vm27, %v1576, 0.0
  %v1595 = vsel %vm27, %v1580, 0.0
  %v1596 = vsel %vm27, %v1584, 0.0
  %v1597 = vmul.f32 %v1585, 0.53033006
  %v1598 = vmul.f32 %v1594, 0.53033006
  %v1599 = vmul.f32 %v1586, 0.53033006
  %v1600 = vmul.f32 %v1595, 0.53033006
  %v1601 = vmul.f32 %v1587, 0.53033006
  %v1602 = vmul.f32 %v1596, 0.53033006
  %v1603 = vadd.f32 %v1561, %v1597
  %v1604 = vadd.f32 %v1562, %v1598
  %v1605 = vadd.f32 %v1563, %v1599
  %v1606 = vadd.f32 %v1564, %v1600
  %v1607 = vadd.f32 %v1565, %v1601
  %v1608 = vadd.f32 %v1566, %v1602
  %1609 = vrot.lane.b32.xlu0 %v1455, 126
  %v1610 = vpop.permute.xlu0 %1609
  %1611 = vrot.lane.b32.xlu0 %v1456, 126
  %v1612 = vpop.permute.xlu0 %1611
  %1613 = vrot.lane.b32.xlu0 %v1457, 126
  %v1614 = vpop.permute.xlu0 %1613
  %1615 = vrot.lane.b32.xlu0 %v1458, 126
  %v1616 = vpop.permute.xlu0 %1615
  %1617 = vrot.lane.b32.xlu0 %v1459, 126
  %v1618 = vpop.permute.xlu0 %1617
  %1619 = vrot.lane.b32.xlu0 %v1460, 126
  %v1620 = vpop.permute.xlu0 %1619
  %v1621 = vsel %vm44, %v1610, %v1612
  %v1622 = vsel %vm44, %v1614, %v1616
  %v1623 = vsel %vm44, %v1618, %v1620
  %v1630 = vsel %vm44, %v1612, 0.0
  %v1631 = vsel %vm44, %v1616, 0.0
  %v1632 = vsel %vm44, %v1620, 0.0
  %v1633 = vmul.f32 %v1621, 0.17677669
  %v1634 = vmul.f32 %v1630, 0.17677669
  %v1635 = vmul.f32 %v1622, 0.17677669
  %v1636 = vmul.f32 %v1631, 0.17677669
  %v1637 = vmul.f32 %v1623, 0.17677669
  %v1638 = vmul.f32 %v1632, 0.17677669
  %v1639 = vadd.f32 %v1603, %v1633
  %v1640 = vadd.f32 %v1604, %v1634
  %v1641 = vadd.f32 %v1605, %v1635
  %v1642 = vadd.f32 %v1606, %v1636
  %v1643 = vadd.f32 %v1607, %v1637
  %v1644 = vadd.f32 %v1608, %v1638
  %v1651 = vrot.slane %v1403, 1
  %v1652 = vrot.slane %v1405, 1
  %v1653 = vsel %vm132, %v1651, %v1652
  %v1654 = vrot.slane %v1404, 1
  %v1655 = vrot.slane %v1406, 1
  %v1656 = vsel %vm132, %v1654, %v1655
  %v1657 = vrot.slane %v1407, 1
  %v1658 = vsel %vm132, %v1652, %v1657
  %v1659 = vrot.slane %v1408, 1
  %v1660 = vsel %vm132, %v1655, %v1659
  %v1667 = vadd.f32 %v1409, %v1653
  %v1668 = vadd.f32 %v1410, %v1656
  %v1669 = vadd.f32 %v1411, %v1658
  %v1670 = vadd.f32 %v1412, %v1660
  %v1671 = vadd.f32 %v1413, %v1657
  %v1672 = vadd.f32 %v1414, %v1659
  %vm1673 = vcmp.ge.f32.partialorder %v1667, 0.0
  %vm1674 = vcmp.ge.f32.partialorder %v1668, 0.0
  %vm1675 = vcmp.ge.f32.partialorder %v1669, 0.0
  %vm1676 = vcmp.ge.f32.partialorder %v1670, 0.0
  %vm1677 = vcmp.ge.f32.partialorder %v1671, 0.0
  %vm1678 = vcmp.ge.f32.partialorder %v1672, 0.0
  %v1679 = vmul.f32 %v1667, 0.2
  %v1680 = vmul.f32 %v1668, 0.2
  %v1681 = vmul.f32 %v1669, 0.2
  %v1682 = vmul.f32 %v1670, 0.2
  %v1683 = vmul.f32 %v1671, 0.2
  %v1684 = vmul.f32 %v1672, 0.2
  %v1685 = vsel %vm1673, %v1667, %v1679
  %v1686 = vsel %vm1674, %v1668, %v1680
  %v1687 = vsel %vm1675, %v1669, %v1681
  %v1688 = vsel %vm1676, %v1670, %v1682
  %v1689 = vsel %vm1677, %v1671, %v1683
  %v1690 = vsel %vm1678, %v1672, %v1684
  %v1697 = vrot.slane %v1461, 1
  %v1698 = vrot.slane %v1463, 1
  %v1699 = vsel %vm132, %v1697, %v1698
  %v1700 = vrot.slane %v1462, 1
  %v1701 = vrot.slane %v1464, 1
  %v1702 = vsel %vm132, %v1700, %v1701
  %v1703 = vrot.slane %v1465, 1
  %v1704 = vsel %vm132, %v1698, %v1703
  %v1705 = vrot.slane %v1466, 1
  %v1706 = vsel %vm132, %v1701, %v1705
  %v1713 = vadd.f32 %v1467, %v1699
  %v1714 = vadd.f32 %v1468, %v1702
  %v1715 = vadd.f32 %v1469, %v1704
  %v1716 = vadd.f32 %v1470, %v1706
  %v1717 = vadd.f32 %v1471, %v1703
  %v1718 = vadd.f32 %v1472, %v1705
  %vm1719 = vcmp.ge.f32.partialorder %v1713, 0.0
  %vm1720 = vcmp.ge.f32.partialorder %v1714, 0.0
  %vm1721 = vcmp.ge.f32.partialorder %v1715, 0.0
  %vm1722 = vcmp.ge.f32.partialorder %v1716, 0.0
  %vm1723 = vcmp.ge.f32.partialorder %v1717, 0.0
  %vm1724 = vcmp.ge.f32.partialorder %v1718, 0.0
  %v1725 = vmul.f32 %v1713, 0.2
  %v1726 = vmul.f32 %v1714, 0.2
  %v1727 = vmul.f32 %v1715, 0.2
  %v1728 = vmul.f32 %v1716, 0.2
  %v1729 = vmul.f32 %v1717, 0.2
  %v1730 = vmul.f32 %v1718, 0.2
  %v1731 = vsel %vm1719, %v1713, %v1725
  %v1732 = vsel %vm1720, %v1714, %v1726
  %v1733 = vsel %vm1721, %v1715, %v1727
  %v1734 = vsel %vm1722, %v1716, %v1728
  %v1735 = vsel %vm1723, %v1717, %v1729
  %v1736 = vsel %vm1724, %v1718, %v1730
  %v1737 = vmul.f32 %v1731, 0.17677669
  %v1738 = vmul.f32 %v1732, 0.17677669
  %v1739 = vmul.f32 %v1733, 0.17677669
  %v1740 = vmul.f32 %v1734, 0.17677669
  %v1741 = vmul.f32 %v1735, 0.17677669
  %v1742 = vmul.f32 %v1736, 0.17677669
  %1749 = vrot.lane.b32.xlu0 %v1685, 127
  %v1750 = vpop.permute.xlu0 %1749
  %1751 = vrot.lane.b32.xlu0 %v1686, 127
  %v1752 = vpop.permute.xlu0 %1751
  %1753 = vrot.lane.b32.xlu0 %v1687, 127
  %v1754 = vpop.permute.xlu0 %1753
  %1755 = vrot.lane.b32.xlu0 %v1688, 127
  %v1756 = vpop.permute.xlu0 %1755
  %1757 = vrot.lane.b32.xlu0 %v1689, 127
  %v1758 = vpop.permute.xlu0 %1757
  %1759 = vrot.lane.b32.xlu0 %v1690, 127
  %v1760 = vpop.permute.xlu0 %1759
  %v1761 = vsel %vm27, %v1750, %v1752
  %v1762 = vsel %vm27, %v1754, %v1756
  %v1763 = vsel %vm27, %v1758, %v1760
  %v1770 = vsel %vm27, %v1752, 0.0
  %v1771 = vsel %vm27, %v1756, 0.0
  %v1772 = vsel %vm27, %v1760, 0.0
  %v1773 = vmul.f32 %v1761, 0.53033006
  %v1774 = vmul.f32 %v1770, 0.53033006
  %v1775 = vmul.f32 %v1762, 0.53033006
  %v1776 = vmul.f32 %v1771, 0.53033006
  %v1777 = vmul.f32 %v1763, 0.53033006
  %v1778 = vmul.f32 %v1772, 0.53033006
  %v1779 = vadd.f32 %v1737, %v1773
  %v1780 = vadd.f32 %v1738, %v1774
  %v1781 = vadd.f32 %v1739, %v1775
  %v1782 = vadd.f32 %v1740, %v1776
  %v1783 = vadd.f32 %v1741, %v1777
  %v1784 = vadd.f32 %v1742, %v1778
  %1791 = vrot.lane.b32.xlu0 %v1731, 127
  %v1792 = vpop.permute.xlu0 %1791
  %1793 = vrot.lane.b32.xlu0 %v1732, 127
  %v1794 = vpop.permute.xlu0 %1793
  %1795 = vrot.lane.b32.xlu0 %v1733, 127
  %v1796 = vpop.permute.xlu0 %1795
  %1797 = vrot.lane.b32.xlu0 %v1734, 127
  %v1798 = vpop.permute.xlu0 %1797
  %1799 = vrot.lane.b32.xlu0 %v1735, 127
  %v1800 = vpop.permute.xlu0 %1799
  %1801 = vrot.lane.b32.xlu0 %v1736, 127
  %v1802 = vpop.permute.xlu0 %1801
  %v1803 = vsel %vm27, %v1792, %v1794
  %v1804 = vsel %vm27, %v1796, %v1798
  %v1805 = vsel %vm27, %v1800, %v1802
  %v1812 = vsel %vm27, %v1794, 0.0
  %v1813 = vsel %vm27, %v1798, 0.0
  %v1814 = vsel %vm27, %v1802, 0.0
  %v1815 = vmul.f32 %v1803, 0.53033006
  %v1816 = vmul.f32 %v1812, 0.53033006
  %v1817 = vmul.f32 %v1804, 0.53033006
  %v1818 = vmul.f32 %v1813, 0.53033006
  %v1819 = vmul.f32 %v1805, 0.53033006
  %v1820 = vmul.f32 %v1814, 0.53033006
  %v1821 = vadd.f32 %v1779, %v1815
  %v1822 = vadd.f32 %v1780, %v1816
  %v1823 = vadd.f32 %v1781, %v1817
  %v1824 = vadd.f32 %v1782, %v1818
  %v1825 = vadd.f32 %v1783, %v1819
  %v1826 = vadd.f32 %v1784, %v1820
  %1827 = vrot.lane.b32.xlu0 %v1685, 126
  %v1828 = vpop.permute.xlu0 %1827
  %1829 = vrot.lane.b32.xlu0 %v1686, 126
  %v1830 = vpop.permute.xlu0 %1829
  %1831 = vrot.lane.b32.xlu0 %v1687, 126
  %v1832 = vpop.permute.xlu0 %1831
  %1833 = vrot.lane.b32.xlu0 %v1688, 126
  %v1834 = vpop.permute.xlu0 %1833
  %1835 = vrot.lane.b32.xlu0 %v1689, 126
  %v1836 = vpop.permute.xlu0 %1835
  %1837 = vrot.lane.b32.xlu0 %v1690, 126
  %v1838 = vpop.permute.xlu0 %1837
  %v1839 = vsel %vm44, %v1828, %v1830
  %v1840 = vsel %vm44, %v1832, %v1834
  %v1841 = vsel %vm44, %v1836, %v1838
  %v1848 = vsel %vm44, %v1830, 0.0
  %v1849 = vsel %vm44, %v1834, 0.0
  %v1850 = vsel %vm44, %v1838, 0.0
  %v1851 = vmul.f32 %v1839, 0.17677669
  %v1852 = vmul.f32 %v1848, 0.17677669
  %v1853 = vmul.f32 %v1840, 0.17677669
  %v1854 = vmul.f32 %v1849, 0.17677669
  %v1855 = vmul.f32 %v1841, 0.17677669
  %v1856 = vmul.f32 %v1850, 0.17677669
  %v1857 = vadd.f32 %v1821, %v1851
  %v1858 = vadd.f32 %v1822, %v1852
  %v1859 = vadd.f32 %v1823, %v1853
  %v1860 = vadd.f32 %v1824, %v1854
  %v1861 = vadd.f32 %v1825, %v1855
  %v1862 = vadd.f32 %v1826, %v1856
  %v1863 = vmul.f32 %v1857, 0.125
  %v1864 = vmul.f32 %v1858, 0.125
  %v1865 = vmul.f32 %v1859, 0.125
  %v1866 = vmul.f32 %v1860, 0.125
  %v1867 = vmul.f32 %v1861, 0.125
  %v1868 = vmul.f32 %v1862, 0.125
  %v1869 = vmul.f32 %v1639, 0.375
  %v1870 = vmul.f32 %v1640, 0.375
  %v1871 = vmul.f32 %v1641, 0.375
  %v1872 = vmul.f32 %v1642, 0.375
  %v1873 = vmul.f32 %v1643, 0.375
  %v1874 = vmul.f32 %v1644, 0.375
  %v1875 = vadd.f32 %v1863, %v1869
  %v1876 = vadd.f32 %v1864, %v1870
  %v1877 = vadd.f32 %v1865, %v1871
  %v1878 = vadd.f32 %v1866, %v1872
  %v1879 = vadd.f32 %v1867, %v1873
  %v1880 = vadd.f32 %v1868, %v1874
  %v1881 = vmul.f32 %v1857, 0.375
  %v1882 = vmul.f32 %v1858, 0.375
  %v1883 = vmul.f32 %v1859, 0.375
  %v1884 = vmul.f32 %v1860, 0.375
  %v1885 = vmul.f32 %v1861, 0.375
  %v1886 = vmul.f32 %v1862, 0.375
  %v1893 = vrot.slane %v1881, 1
  %v1894 = vrot.slane %v1883, 1
  %v1895 = vsel %vm132, %v1893, %v1894
  %v1896 = vrot.slane %v1882, 1
  %v1897 = vrot.slane %v1884, 1
  %v1898 = vsel %vm132, %v1896, %v1897
  %v1899 = vrot.slane %v1885, 1
  %v1900 = vsel %vm132, %v1894, %v1899
  %v1901 = vrot.slane %v1886, 1
  %v1902 = vsel %vm132, %v1897, %v1901
  %v1909 = vadd.f32 %v1875, %v1895
  %v1910 = vadd.f32 %v1876, %v1898
  %v1911 = vadd.f32 %v1877, %v1900
  %v1912 = vadd.f32 %v1878, %v1902
  %v1913 = vadd.f32 %v1879, %v1899
  %v1914 = vadd.f32 %v1880, %v1901
  %v1915 = vmul.f32 %v1639, 0.125
  %v1916 = vmul.f32 %v1640, 0.125
  %v1917 = vmul.f32 %v1641, 0.125
  %v1918 = vmul.f32 %v1642, 0.125
  %v1919 = vmul.f32 %v1643, 0.125
  %v1920 = vmul.f32 %v1644, 0.125
  %v1927 = vrot.slane %v1915, 1
  %v1928 = vrot.slane %v1917, 1
  %v1929 = vsel %vm132, %v1927, %v1928
  %v1930 = vrot.slane %v1916, 1
  %v1931 = vrot.slane %v1918, 1
  %v1932 = vsel %vm132, %v1930, %v1931
  %v1933 = vrot.slane %v1919, 1
  %v1934 = vsel %vm132, %v1928, %v1933
  %v1935 = vrot.slane %v1920, 1
  %v1936 = vsel %vm132, %v1931, %v1935
  %v1943 = vadd.f32 %v1909, %v1929
  %v1944 = vadd.f32 %v1910, %v1932
  %v1945 = vadd.f32 %v1911, %v1934
  %v1946 = vadd.f32 %v1912, %v1936
  %v1947 = vadd.f32 %v1913, %v1933
  %v1948 = vadd.f32 %v1914, %v1935
  %v1955 = vrot.slane %v1943, 1
  %v1956 = vrot.slane %v1945, 1
  %v1957 = vsel %vm132, %v1955, %v1956
  %v1958 = vrot.slane %v1944, 1
  %v1959 = vrot.slane %v1946, 1
  %v1960 = vsel %vm132, %v1958, %v1959
  %v1961 = vrot.slane %v1947, 1
  %v1962 = vsel %vm132, %v1956, %v1961
  %v1963 = vrot.slane %v1948, 1
  %v1964 = vsel %vm132, %v1959, %v1963
  %1969 = vst [vmem:[%s2] sm:$0xff] %v1957
  %1970 = vst [vmem:[%s2 + $0x8] sm:$0xff] %v1960
  %1971 = vst [vmem:[%s2 + $0x10] sm:$0xff] %v1962
  %1972 = vst [vmem:[%s2 + $0x18] sm:$0xff] %v1964
  // Predicated region
  $region10: #{alias_free_conv.1} parent=0 // pred_check
    _
  $region11: #{alias_free_conv.1} parent=0 // pred_check_branch
    %1974 = sbr.rel (0) target = $region13
  $region12: #{alias_free_conv.1} parent=0 // pred_region
    _
  $region13: #{alias_free_conv.1} parent=0 // pred_fallthru
    _
  // Predicated region
  $region14: #{alias_free_conv.1} parent=0 // pred_check
    _
  $region15: #{alias_free_conv.1} parent=0 // pred_check_branch
    %1976 = sbr.rel (0) target = $region17
  $region16: #{alias_free_conv.1} parent=0 // pred_region
    _
  $region17: #{alias_free_conv.1} parent=0 // pred_fallthru
    _

</llo_original>
